<compile_context>
chip_gen: v6e
topology: v6e:2x2x1
jax: 0.10.0
libtpu: 0.0.40
codegen_flags: <defaults>
</compile_context>

<pallas_src>
import functools

import jax
import jax.numpy as jnp
from jax import lax
from jax.experimental import pallas as pl
from jax.experimental.pallas import tpu as pltpu

# -------------------- scaled-down config --------------------
BATCH = 2
SEQ = 16
VOCAB = 64
HIDDEN = 128          # real MiniLM-L12: 384 (multiple of 128 kept for lane density)
NUM_LAYERS = 2        # real: 12
NUM_HEADS = 4         # real: 12
HEAD_DIM = HIDDEN // NUM_HEADS
FFN = 256             # real: 1536
TEACHER_HIDDEN = 128  # real: 768 (mpnet-base); multiple of 128 for lane density
LN_EPS = 1e-12
B_TILE = 1            # batch rows per grid step; BATCH // B_TILE parallel steps (even)


# -------------------- in-kernel math helpers --------------------
def _gelu(x):
    # TODO(synk): HF BERT/MiniLM uses exact erf-GELU; tanh approximation used here.
    c = jnp.float32(0.7978845608028654)  # sqrt(2/pi)
    return 0.5 * x * (1.0 + jnp.tanh(c * (x + 0.044715 * x * x * x)))


def _layer_norm(y, gamma, beta, eps):
    mu = jnp.mean(y, axis=-1, keepdims=True)
    d = y - mu
    var = jnp.mean(d * d, axis=-1, keepdims=True)
    return d * lax.rsqrt(var + eps) * gamma + beta


# -------------------- fused encoder-stack kernel --------------------
def fused_encoder_kernel(emb_ref, bias_ref, embg_ref, embb_ref,
                         wqkv_ref, bqkv_ref, wo_ref, bo_ref,
                         ln1g_ref, ln1b_ref, w1_ref, b1_ref,
                         w2_ref, b2_ref, ln2g_ref, ln2b_ref,
                         projw_ref, projb_ref,
                         out_ref, x_vmem, *, num_heads, eps):
    layer = pl.program_id(1)
    bt, S, H = emb_ref.shape
    M = bt * S
    hd = H // num_heads

    # ---- layer-0 prologue: embedding LayerNorm into the resident activation ----
    @pl.when(layer == 0)
    def _():
        e = emb_ref[...].astype(jnp.float32).reshape(M, H)
        x_vmem[...] = _layer_norm(e, embg_ref[...], embb_ref[...], eps).astype(jnp.bfloat16)

    x_bf = x_vmem[...]                                         # (M, H) bf16 residual

    # ---- fused QKV projection over the flattened (B_TILE*S) M axis (QK scale folded) ----
    qkv = jnp.dot(x_bf, wqkv_ref[0],
                  preferred_element_type=jnp.float32) + bqkv_ref[0]   # (M, 3H) f32

    # ---- multi-head self-attention (per sequence, per head) ----
    bias_all = bias_ref[...]                                   # (bt, 1, S) f32
    wo = wo_ref[0]                                             # (H, H) bf16
    seq_outs = []
    for b in range(bt):
        r0 = b * S
        bias_b = bias_all[b]                                   # (1, S)
        acc = jnp.zeros((S, H), jnp.float32)
        for n in range(num_heads):
            qn = qkv[r0:r0 + S, n * hd:(n + 1) * hd].astype(jnp.bfloat16)
            kn = qkv[r0:r0 + S, H + n * hd:H + (n + 1) * hd].astype(jnp.bfloat16)
            vn = qkv[r0:r0 + S, 2 * H + n * hd:2 * H + (n + 1) * hd].astype(jnp.bfloat16)
            s = lax.dot_general(qn, kn, (((1,), (1,)), ((), ())),
                                preferred_element_type=jnp.float32)     # (S, S)
            s = s + bias_b
            m = jnp.max(s, axis=-1, keepdims=True)
            p = jnp.exp(s - m)
            p = p * pl.reciprocal(jnp.sum(p, axis=-1, keepdims=True), approx=True)
            ctx = jnp.dot(p.astype(jnp.bfloat16), vn,
                          preferred_element_type=jnp.float32)           # (S, hd)
            acc = acc + jnp.dot(ctx.astype(jnp.bfloat16),
                                wo[n * hd:(n + 1) * hd, :],
                                preferred_element_type=jnp.float32)     # (S, H)
        seq_outs.append(acc)
    attn = seq_outs[0] if bt == 1 else jnp.concatenate(seq_outs, axis=0)
    attn = attn + bo_ref[0]                                    # (M, H) f32

    # ---- add & LN1 (residual cast at point of use; f32 math) ----
    y = _layer_norm(attn + x_bf.astype(jnp.float32), ln1g_ref[0], ln1b_ref[0], eps)

    # ---- FFN (flattened M) + add & LN2 ----
    h = jnp.dot(y.astype(jnp.bfloat16), w1_ref[0], preferred_element_type=jnp.float32)
    h = _gelu(h + b1_ref[0])
    ff = jnp.dot(h.astype(jnp.bfloat16), w2_ref[0],
                 preferred_element_type=jnp.float32) + b2_ref[0]
    out = _layer_norm(ff + y, ln2g_ref[0], ln2b_ref[0], eps)
    x_vmem[...] = out.astype(jnp.bfloat16)                     # carry to next layer

    # ---- last-layer epilogue: mean pool over S + teacher projection ----
    @pl.when(layer == pl.num_programs(1) - 1)
    def _():
        pooled = jnp.sum(out.reshape(bt, S, H), axis=1) * (1.0 / S)       # (bt, H)
        proj = jnp.dot(pooled.astype(jnp.bfloat16), projw_ref[...],
                       preferred_element_type=jnp.float32) + projb_ref[...]
        out_ref[...] = proj.reshape(bt, 1, -1).astype(out_ref.dtype)


def fused_forward(emb_bf16, mask_bias, sp):
    """Full encoder stack + mean pool + projection in one pallas_call.

    emb_bf16: (B, S, H) bf16 embedding sums; mask_bias: (B, 1, S) f32 additive bias.
    Returns (B, TEACHER_HIDDEN) f32.
    """
    B, S, H = emb_bf16.shape
    L = sp["wqkv"].shape[0]
    T = sp["proj_w"].shape[1]
    assert B % B_TILE == 0
    grid = (B // B_TILE, L)

    def layer_spec(shape):        # (L, ...) stacked weights, pipelined over the layer axis
        return pl.BlockSpec(shape, lambda b, l: (l,) + (0,) * (len(shape) - 1))

    def const_spec(shape):        # grid-invariant params, fetched once
        return pl.BlockSpec(shape, lambda b, l: (0,) * len(shape))

    out3 = pl.pallas_call(
        functools.partial(fused_encoder_kernel, num_heads=NUM_HEADS, eps=LN_EPS),
        out_shape=jax.ShapeDtypeStruct((B, 1, T), jnp.float32),
        grid=grid,
        in_specs=[
            pl.BlockSpec((B_TILE, S, H), lambda b, l: (b, 0, 0)),   # embeddings (bf16)
            pl.BlockSpec((B_TILE, 1, S), lambda b, l: (b, 0, 0)),   # additive mask bias
            const_spec((1, H)), const_spec((1, H)),                 # emb LN gamma/beta
            layer_spec((1, H, 3 * H)), layer_spec((1, 1, 3 * H)),   # wqkv, bqkv
            layer_spec((1, H, H)), layer_spec((1, 1, H)),           # wo, bo
            layer_spec((1, 1, H)), layer_spec((1, 1, H)),           # ln1 g/b
            layer_spec((1, H, FFN)), layer_spec((1, 1, FFN)),       # w1, b1
            layer_spec((1, FFN, H)), layer_spec((1, 1, H)),         # w2, b2
            layer_spec((1, 1, H)), layer_spec((1, 1, H)),           # ln2 g/b
            const_spec((H, T)), const_spec((1, T)),                 # proj w/b
        ],
        out_specs=pl.BlockSpec((B_TILE, 1, T), lambda b, l: (b, 0, 0)),
        scratch_shapes=[pltpu.VMEM((B_TILE * S, H), jnp.bfloat16)],  # resident activation
        compiler_params=pltpu.CompilerParams(
            dimension_semantics=("parallel", "arbitrary")),
    )(emb_bf16, mask_bias,
      sp["emb_ln_g"], sp["emb_ln_b"],
      sp["wqkv"], sp["bqkv"], sp["wo"], sp["bo"],
      sp["ln1_g"], sp["ln1_b"], sp["w1"], sp["b1"],
      sp["w2"], sp["b2"], sp["ln2_g"], sp["ln2_b"],
      sp["proj_w"], sp["proj_b"])
    return out3.reshape(B, T)


# -------------------- parameters --------------------
def init_params(key):
    def normal(k, shape, scale=0.02):
        return (scale * jax.random.normal(k, shape)).astype(jnp.float32)

    keys = jax.random.split(key, 8 + NUM_LAYERS)
    params = {
        "word_emb": normal(keys[0], (VOCAB, HIDDEN)),
        "pos_emb": normal(keys[1], (SEQ, HIDDEN)),
        "type_emb": normal(keys[2], (2, HIDDEN)),
        "emb_ln_g": jnp.ones((1, HIDDEN), jnp.float32),
        "emb_ln_b": jnp.zeros((1, HIDDEN), jnp.float32),
        "proj_w": normal(keys[3], (HIDDEN, TEACHER_HIDDEN)),
        "proj_b": jnp.zeros((1, TEACHER_HIDDEN), jnp.float32),
        "layers": [],
    }
    for l in range(NUM_LAYERS):
        lk = jax.random.split(keys[8 + l], 6)
        params["layers"].append({
            "wq": normal(lk[0], (HIDDEN, HIDDEN)),
            "bq": jnp.zeros((1, HIDDEN), jnp.float32),
            "wk": normal(lk[1], (HIDDEN, HIDDEN)),
            "bk": jnp.zeros((1, HIDDEN), jnp.float32),
            "wv": normal(lk[2], (HIDDEN, HIDDEN)),
            "bv": jnp.zeros((1, HIDDEN), jnp.float32),
            "wo": normal(lk[3], (HIDDEN, HIDDEN)),
            "bo": jnp.zeros((1, HIDDEN), jnp.float32),
            "ln1_g": jnp.ones((1, HIDDEN), jnp.float32),
            "ln1_b": jnp.zeros((1, HIDDEN), jnp.float32),
            "w1": normal(lk[4], (HIDDEN, FFN)),
            "b1": jnp.zeros((1, FFN), jnp.float32),
            "w2": normal(lk[5], (FFN, HIDDEN)),
            "b2": jnp.zeros((1, HIDDEN), jnp.float32),
            "ln2_g": jnp.ones((1, HIDDEN), jnp.float32),
            "ln2_b": jnp.zeros((1, HIDDEN), jnp.float32),
        })
    return params


def prepare_fused_params(params):
    """Fuse wq|wk|wv into (H, 3H), fold the 1/sqrt(head_dim) scale into wq/bq, stack
    per-layer weights along a leading L axis (pipelined over the layer grid axis), and
    cast matmul weights + embedding tables to bf16.  Biases / LN params stay f32."""
    scale = 1.0 / float(HEAD_DIM) ** 0.5
    layers = params["layers"]

    def stack(fn, dtype=None):
        a = jnp.stack([fn(p) for p in layers], axis=0)
        return a.astype(dtype) if dtype is not None else a

    return {
        "word_emb": params["word_emb"].astype(jnp.bfloat16),
        "pos_emb": params["pos_emb"].astype(jnp.bfloat16),
        "type_emb": params["type_emb"].astype(jnp.bfloat16),
        "emb_ln_g": params["emb_ln_g"],
        "emb_ln_b": params["emb_ln_b"],
        "proj_w": params["proj_w"].astype(jnp.bfloat16),
        "proj_b": params["proj_b"],
        "wqkv": stack(lambda p: jnp.concatenate(
            [p["wq"] * scale, p["wk"], p["wv"]], axis=1), jnp.bfloat16),
        "bqkv": stack(lambda p: jnp.concatenate(
            [p["bq"] * scale, p["bk"], p["bv"]], axis=1)),
        "wo": stack(lambda p: p["wo"], jnp.bfloat16),
        "bo": stack(lambda p: p["bo"]),
        "ln1_g": stack(lambda p: p["ln1_g"]),
        "ln1_b": stack(lambda p: p["ln1_b"]),
        "w1": stack(lambda p: p["w1"], jnp.bfloat16),
        "b1": stack(lambda p: p["b1"]),
        "w2": stack(lambda p: p["w2"], jnp.bfloat16),
        "b2": stack(lambda p: p["b2"]),
        "ln2_g": stack(lambda p: p["ln2_g"]),
        "ln2_b": stack(lambda p: p["ln2_b"]),
    }


# -------------------- model forward --------------------
def student_forward(params, input_ids, attention_mask):
    B, S = input_ids.shape
    # Embedding gather + sum (bf16) is plain-JAX glue (table lookup, not the hot path).
    emb = (params["word_emb"][input_ids]
           + params["pos_emb"][None, :S, :]
           + params["type_emb"][0][None, None, :]).astype(jnp.bfloat16)   # (B, S, H)
    # HF-BERT extended attention mask: additive bias, 0 for keep / -1e9 for pad.
    mask_bias = ((1.0 - attention_mask.astype(jnp.float32)) * -1e9)[:, None, :]
    # embeddings = last_hidden_state.mean(dim=1); projected = Linear(embeddings)
    return fused_forward(emb, mask_bias, params)


if __name__ == "__main__":
    key = jax.random.PRNGKey(0)
    k_param, k_ids = jax.random.split(key)

    params = prepare_fused_params(init_params(k_param))
    input_ids = jax.random.randint(k_ids, (BATCH, SEQ), 0, VOCAB, dtype=jnp.int32)
    attention_mask = jnp.ones((BATCH, SEQ), jnp.int32)
    attention_mask = attention_mask.at[1, SEQ - 4:].set(0)  # some padding in row 1

    out = jax.jit(student_forward)(params, input_ids, attention_mask)
    out = jax.block_until_ready(out)
    assert out.shape == (BATCH, TEACHER_HIDDEN) and out.dtype == jnp.float32
    print("KERNEL_OK")
</pallas_src>

<mosaic_0001>
module attributes {stable_mosaic.version = 11 : i64} {
  func.func @fused_encoder_kernel(%arg0: i32, %arg1: i32, %arg2: memref<1x16x128xbf16, #tpu.memory_space<vmem>>, %arg3: memref<1x1x16xf32, #tpu.memory_space<vmem>>, %arg4: memref<1x128xf32, #tpu.memory_space<vmem>>, %arg5: memref<1x128xf32, #tpu.memory_space<vmem>>, %arg6: memref<1x128x384xbf16, #tpu.memory_space<vmem>>, %arg7: memref<1x1x384xf32, #tpu.memory_space<vmem>>, %arg8: memref<1x128x128xbf16, #tpu.memory_space<vmem>>, %arg9: memref<1x1x128xf32, #tpu.memory_space<vmem>>, %arg10: memref<1x1x128xf32, #tpu.memory_space<vmem>>, %arg11: memref<1x1x128xf32, #tpu.memory_space<vmem>>, %arg12: memref<1x128x256xbf16, #tpu.memory_space<vmem>>, %arg13: memref<1x1x256xf32, #tpu.memory_space<vmem>>, %arg14: memref<1x256x128xbf16, #tpu.memory_space<vmem>>, %arg15: memref<1x1x128xf32, #tpu.memory_space<vmem>>, %arg16: memref<1x1x128xf32, #tpu.memory_space<vmem>>, %arg17: memref<1x1x128xf32, #tpu.memory_space<vmem>>, %arg18: memref<128x128xbf16, #tpu.memory_space<vmem>>, %arg19: memref<1x128xf32, #tpu.memory_space<vmem>>, %arg20: memref<1x1x128xf32, #tpu.memory_space<vmem>>, %arg21: memref<16x128xbf16, #tpu.memory_space<vmem>>) attributes {dimension_semantics = [#tpu.dimension_semantics<parallel>, #tpu.dimension_semantics<arbitrary>], iteration_bounds = array<i64: 2, 2>, scalar_prefetch = 0 : i64, scratch_operands = 1 : i64, tpu.core_type = #tpu.core_type<tc>, window_params = [{transform_indices = @transform_0, window_bounds = array<i64: 1, 16, 128>}, {transform_indices = @transform_1, window_bounds = array<i64: 1, 1, 16>}, {pipeline_mode = #tpu.pipeline_mode<synchronous>, transform_indices = @transform_2, window_bounds = array<i64: 1, 128>}, {pipeline_mode = #tpu.pipeline_mode<synchronous>, transform_indices = @transform_3, window_bounds = array<i64: 1, 128>}, {transform_indices = @transform_4, window_bounds = array<i64: 1, 128, 384>}, {transform_indices = @transform_5, window_bounds = array<i64: 1, 1, 384>}, {transform_indices = @transform_6, window_bounds = array<i64: 1, 128, 128>}, {transform_indices = @transform_7, window_bounds = array<i64: 1, 1, 128>}, {transform_indices = @transform_8, window_bounds = array<i64: 1, 1, 128>}, {transform_indices = @transform_9, window_bounds = array<i64: 1, 1, 128>}, {transform_indices = @transform_10, window_bounds = array<i64: 1, 128, 256>}, {transform_indices = @transform_11, window_bounds = array<i64: 1, 1, 256>}, {transform_indices = @transform_12, window_bounds = array<i64: 1, 256, 128>}, {transform_indices = @transform_13, window_bounds = array<i64: 1, 1, 128>}, {transform_indices = @transform_14, window_bounds = array<i64: 1, 1, 128>}, {transform_indices = @transform_15, window_bounds = array<i64: 1, 1, 128>}, {pipeline_mode = #tpu.pipeline_mode<synchronous>, transform_indices = @transform_16, window_bounds = array<i64: 128, 128>}, {pipeline_mode = #tpu.pipeline_mode<synchronous>, transform_indices = @transform_17, window_bounds = array<i64: 1, 128>}, {transform_indices = @transform_18, window_bounds = array<i64: 1, 1, 128>}]} {
    %c0_i32 = arith.constant 0 : i32
    %0 = arith.cmpi eq, %arg1, %c0_i32 : i32
    %1 = arith.extui %0 : i1 to i32
    %c0_i32_0 = arith.constant 0 : i32
    %2 = arith.cmpi ne, %1, %c0_i32_0 : i32
    scf.if %2 {
      %c0_81 = arith.constant 0 : index
      %c0_82 = arith.constant 0 : index
      %c0_83 = arith.constant 0 : index
      %205 = vector.load %arg2[%c0_81, %c0_82, %c0_83] : memref<1x16x128xbf16, #tpu.memory_space<vmem>>, vector<1x16x128xbf16>
      %206 = arith.extf %205 : vector<1x16x128xbf16> to vector<1x16x128xf32>
      %207 = vector.shape_cast %206 : vector<1x16x128xf32> to vector<16x128xf32>
      %c0_84 = arith.constant 0 : index
      %c0_85 = arith.constant 0 : index
      %208 = vector.load %arg4[%c0_84, %c0_85] : memref<1x128xf32, #tpu.memory_space<vmem>>, vector<1x128xf32>
      %c0_86 = arith.constant 0 : index
      %c0_87 = arith.constant 0 : index
      %209 = vector.load %arg5[%c0_86, %c0_87] : memref<1x128xf32, #tpu.memory_space<vmem>>, vector<1x128xf32>
      %cst_88 = arith.constant dense<0.000000e+00> : vector<16xf32>
      %210 = vector.multi_reduction <add>, %207, %cst_88 [1] : vector<16x128xf32> to vector<16xf32>
      %211 = vector.shape_cast %210 : vector<16xf32> to vector<16x1xf32>
      %cst_89 = arith.constant 1.280000e+02 : f32
      %212 = vector.broadcast %cst_89 : f32 to vector<16x1xf32>
      %213 = arith.divf %211, %212 : vector<16x1xf32>
      %214 = vector.broadcast %213 : vector<16x1xf32> to vector<16x128xf32>
      %215 = arith.subf %207, %214 : vector<16x128xf32>
      %216 = arith.mulf %215, %215 : vector<16x128xf32>
      %cst_90 = arith.constant dense<0.000000e+00> : vector<16xf32>
      %217 = vector.multi_reduction <add>, %216, %cst_90 [1] : vector<16x128xf32> to vector<16xf32>
      %218 = vector.shape_cast %217 : vector<16xf32> to vector<16x1xf32>
      %cst_91 = arith.constant 1.280000e+02 : f32
      %219 = vector.broadcast %cst_91 : f32 to vector<16x1xf32>
      %220 = arith.divf %218, %219 : vector<16x1xf32>
      %cst_92 = arith.constant 9.99999996E-13 : f32
      %221 = vector.broadcast %cst_92 : f32 to vector<16x1xf32>
      %222 = arith.addf %220, %221 : vector<16x1xf32>
      %223 = math.rsqrt %222 : vector<16x1xf32>
      %224 = vector.broadcast %223 : vector<16x1xf32> to vector<16x128xf32>
      %225 = arith.mulf %215, %224 : vector<16x128xf32>
      %226 = vector.broadcast %208 : vector<1x128xf32> to vector<16x128xf32>
      %227 = arith.mulf %225, %226 : vector<16x128xf32>
      %228 = vector.broadcast %209 : vector<1x128xf32> to vector<16x128xf32>
      %229 = arith.addf %227, %228 : vector<16x128xf32>
      %230 = arith.truncf %229 : vector<16x128xf32> to vector<16x128xbf16>
      %c0_93 = arith.constant 0 : index
      %c0_94 = arith.constant 0 : index
      %231 = vector.load %arg21[%c0_93, %c0_94] : memref<16x128xbf16, #tpu.memory_space<vmem>>, vector<16x128xbf16>
      tpu.vector_store %arg21[%c0_93, %c0_94], %230 {strides = array<i32>} : memref<16x128xbf16, #tpu.memory_space<vmem>>, vector<16x128xbf16>,
    } else {
    }
    %c0 = arith.constant 0 : index
    %c0_1 = arith.constant 0 : index
    %3 = vector.load %arg21[%c0, %c0_1] : memref<16x128xbf16, #tpu.memory_space<vmem>>, vector<16x128xbf16>
    %c0_2 = arith.constant 0 : index
    %c0_3 = arith.constant 0 : index
    %c0_4 = arith.constant 0 : index
    %4 = vector.load %arg6[%c0_2, %c0_3, %c0_4] : memref<1x128x384xbf16, #tpu.memory_space<vmem>>, vector<1x128x384xbf16>
    %5 = vector.shape_cast %4 : vector<1x128x384xbf16> to vector<128x384xbf16>
    %cst = arith.constant dense<0.000000e+00> : vector<16x384xf32>
    %6 = tpu.matmul %3, %5, %cst {dimension_numbers = #tpu.dot_dimension_numbers<[1], [0], [0], [1], [0, 0, 1, 1], [], []>} : vector<16x128xbf16>, vector<128x384xbf16>, vector<16x384xf32> -> vector<16x384xf32>
    %c0_5 = arith.constant 0 : index
    %c0_6 = arith.constant 0 : index
    %c0_7 = arith.constant 0 : index
    %7 = vector.load %arg7[%c0_5, %c0_6, %c0_7] : memref<1x1x384xf32, #tpu.memory_space<vmem>>, vector<1x1x384xf32>
    %8 = vector.shape_cast %7 : vector<1x1x384xf32> to vector<1x384xf32>
    %9 = vector.broadcast %8 : vector<1x384xf32> to vector<16x384xf32>
    %10 = arith.addf %6, %9 : vector<16x384xf32>
    %c0_8 = arith.constant 0 : index
    %c0_9 = arith.constant 0 : index
    %c0_10 = arith.constant 0 : index
    %11 = vector.load %arg3[%c0_8, %c0_9, %c0_10] : memref<1x1x16xf32, #tpu.memory_space<vmem>>, vector<1x1x16xf32>
    %c0_11 = arith.constant 0 : index
    %c0_12 = arith.constant 0 : index
    %c0_13 = arith.constant 0 : index
    %12 = vector.load %arg8[%c0_11, %c0_12, %c0_13] : memref<1x128x128xbf16, #tpu.memory_space<vmem>>, vector<1x128x128xbf16>
    %13 = vector.shape_cast %12 : vector<1x128x128xbf16> to vector<128x128xbf16>
    %14 = vector.shape_cast %11 : vector<1x1x16xf32> to vector<1x16xf32>
    %cst_14 = arith.constant 0.000000e+00 : f32
    %15 = vector.broadcast %cst_14 : f32 to vector<16x128xf32>
    %16 = vector.extract_strided_slice %10 {offsets = [0, 0], sizes = [16, 32], strides = [1, 1]} : vector<16x384xf32> to vector<16x32xf32>
    %17 = arith.truncf %16 : vector<16x32xf32> to vector<16x32xbf16>
    %18 = vector.extract_strided_slice %10 {offsets = [0, 128], sizes = [16, 32], strides = [1, 1]} : vector<16x384xf32> to vector<16x32xf32>
    %19 = arith.truncf %18 : vector<16x32xf32> to vector<16x32xbf16>
    %20 = vector.extract_strided_slice %10 {offsets = [0, 256], sizes = [16, 32], strides = [1, 1]} : vector<16x384xf32> to vector<16x32xf32>
    %21 = arith.truncf %20 : vector<16x32xf32> to vector<16x32xbf16>
    %cst_15 = arith.constant dense<0.000000e+00> : vector<16x16xf32>
    %22 = tpu.matmul %17, %19, %cst_15 {dimension_numbers = #tpu.dot_dimension_numbers<[1], [1], [0], [0], [0, 0, 1, 0], [], []>} : vector<16x32xbf16>, vector<16x32xbf16>, vector<16x16xf32> -> vector<16x16xf32>
    %23 = vector.broadcast %14 : vector<1x16xf32> to vector<16x16xf32>
    %24 = arith.addf %22, %23 : vector<16x16xf32>
    %cst_16 = arith.constant dense<0xFF800000> : vector<16xf32>
    %25 = vector.multi_reduction <maximumf>, %24, %cst_16 [1] : vector<16x16xf32> to vector<16xf32>
    %26 = vector.shape_cast %25 : vector<16xf32> to vector<16x1xf32>
    %27 = vector.broadcast %26 : vector<16x1xf32> to vector<16x16xf32>
    %28 = arith.subf %24, %27 : vector<16x16xf32>
    %29 = math.exp %28 : vector<16x16xf32>
    %cst_17 = arith.constant dense<0.000000e+00> : vector<16xf32>
    %30 = vector.multi_reduction <add>, %29, %cst_17 [1] : vector<16x16xf32> to vector<16xf32>
    %31 = vector.shape_cast %30 : vector<16xf32> to vector<16x1xf32>
    %32 = tpu.reciprocal %31 {approx = true} : vector<16x1xf32> -> vector<16x1xf32>
    %33 = vector.broadcast %32 : vector<16x1xf32> to vector<16x16xf32>
    %34 = arith.mulf %29, %33 : vector<16x16xf32>
    %35 = arith.truncf %34 : vector<16x16xf32> to vector<16x16xbf16>
    %cst_18 = arith.constant dense<0.000000e+00> : vector<16x32xf32>
    %36 = tpu.matmul %35, %21, %cst_18 {dimension_numbers = #tpu.dot_dimension_numbers<[1], [0], [0], [1], [0, 0, 1, 1], [], []>} : vector<16x16xbf16>, vector<16x32xbf16>, vector<16x32xf32> -> vector<16x32xf32>
    %37 = arith.truncf %36 : vector<16x32xf32> to vector<16x32xbf16>
    %38 = vector.extract_strided_slice %13 {offsets = [0, 0], sizes = [32, 128], strides = [1, 1]} : vector<128x128xbf16> to vector<32x128xbf16>
    %cst_19 = arith.constant dense<0.000000e+00> : vector<16x128xf32>
    %39 = tpu.matmul %37, %38, %cst_19 {dimension_numbers = #tpu.dot_dimension_numbers<[1], [0], [0], [1], [0, 0, 1, 1], [], []>} : vector<16x32xbf16>, vector<32x128xbf16>, vector<16x128xf32> -> vector<16x128xf32>
    %40 = arith.addf %15, %39 : vector<16x128xf32>
    %41 = vector.extract_strided_slice %10 {offsets = [0, 32], sizes = [16, 32], strides = [1, 1]} : vector<16x384xf32> to vector<16x32xf32>
    %42 = arith.truncf %41 : vector<16x32xf32> to vector<16x32xbf16>
    %43 = vector.extract_strided_slice %10 {offsets = [0, 160], sizes = [16, 32], strides = [1, 1]} : vector<16x384xf32> to vector<16x32xf32>
    %44 = arith.truncf %43 : vector<16x32xf32> to vector<16x32xbf16>
    %45 = vector.extract_strided_slice %10 {offsets = [0, 288], sizes = [16, 32], strides = [1, 1]} : vector<16x384xf32> to vector<16x32xf32>
    %46 = arith.truncf %45 : vector<16x32xf32> to vector<16x32xbf16>
    %cst_20 = arith.constant dense<0.000000e+00> : vector<16x16xf32>
    %47 = tpu.matmul %42, %44, %cst_20 {dimension_numbers = #tpu.dot_dimension_numbers<[1], [1], [0], [0], [0, 0, 1, 0], [], []>} : vector<16x32xbf16>, vector<16x32xbf16>, vector<16x16xf32> -> vector<16x16xf32>
    %48 = vector.broadcast %14 : vector<1x16xf32> to vector<16x16xf32>
    %49 = arith.addf %47, %48 : vector<16x16xf32>
    %cst_21 = arith.constant dense<0xFF800000> : vector<16xf32>
    %50 = vector.multi_reduction <maximumf>, %49, %cst_21 [1] : vector<16x16xf32> to vector<16xf32>
    %51 = vector.shape_cast %50 : vector<16xf32> to vector<16x1xf32>
    %52 = vector.broadcast %51 : vector<16x1xf32> to vector<16x16xf32>
    %53 = arith.subf %49, %52 : vector<16x16xf32>
    %54 = math.exp %53 : vector<16x16xf32>
    %cst_22 = arith.constant dense<0.000000e+00> : vector<16xf32>
    %55 = vector.multi_reduction <add>, %54, %cst_22 [1] : vector<16x16xf32> to vector<16xf32>
    %56 = vector.shape_cast %55 : vector<16xf32> to vector<16x1xf32>
    %57 = tpu.reciprocal %56 {approx = true} : vector<16x1xf32> -> vector<16x1xf32>
    %58 = vector.broadcast %57 : vector<16x1xf32> to vector<16x16xf32>
    %59 = arith.mulf %54, %58 : vector<16x16xf32>
    %60 = arith.truncf %59 : vector<16x16xf32> to vector<16x16xbf16>
    %cst_23 = arith.constant dense<0.000000e+00> : vector<16x32xf32>
    %61 = tpu.matmul %60, %46, %cst_23 {dimension_numbers = #tpu.dot_dimension_numbers<[1], [0], [0], [1], [0, 0, 1, 1], [], []>} : vector<16x16xbf16>, vector<16x32xbf16>, vector<16x32xf32> -> vector<16x32xf32>
    %62 = arith.truncf %61 : vector<16x32xf32> to vector<16x32xbf16>
    %63 = vector.extract_strided_slice %13 {offsets = [32, 0], sizes = [32, 128], strides = [1, 1]} : vector<128x128xbf16> to vector<32x128xbf16>
    %cst_24 = arith.constant dense<0.000000e+00> : vector<16x128xf32>
    %64 = tpu.matmul %62, %63, %cst_24 {dimension_numbers = #tpu.dot_dimension_numbers<[1], [0], [0], [1], [0, 0, 1, 1], [], []>} : vector<16x32xbf16>, vector<32x128xbf16>, vector<16x128xf32> -> vector<16x128xf32>
    %65 = arith.addf %40, %64 : vector<16x128xf32>
    %66 = vector.extract_strided_slice %10 {offsets = [0, 64], sizes = [16, 32], strides = [1, 1]} : vector<16x384xf32> to vector<16x32xf32>
    %67 = arith.truncf %66 : vector<16x32xf32> to vector<16x32xbf16>
    %68 = vector.extract_strided_slice %10 {offsets = [0, 192], sizes = [16, 32], strides = [1, 1]} : vector<16x384xf32> to vector<16x32xf32>
    %69 = arith.truncf %68 : vector<16x32xf32> to vector<16x32xbf16>
    %70 = vector.extract_strided_slice %10 {offsets = [0, 320], sizes = [16, 32], strides = [1, 1]} : vector<16x384xf32> to vector<16x32xf32>
    %71 = arith.truncf %70 : vector<16x32xf32> to vector<16x32xbf16>
    %cst_25 = arith.constant dense<0.000000e+00> : vector<16x16xf32>
    %72 = tpu.matmul %67, %69, %cst_25 {dimension_numbers = #tpu.dot_dimension_numbers<[1], [1], [0], [0], [0, 0, 1, 0], [], []>} : vector<16x32xbf16>, vector<16x32xbf16>, vector<16x16xf32> -> vector<16x16xf32>
    %73 = vector.broadcast %14 : vector<1x16xf32> to vector<16x16xf32>
    %74 = arith.addf %72, %73 : vector<16x16xf32>
    %cst_26 = arith.constant dense<0xFF800000> : vector<16xf32>
    %75 = vector.multi_reduction <maximumf>, %74, %cst_26 [1] : vector<16x16xf32> to vector<16xf32>
    %76 = vector.shape_cast %75 : vector<16xf32> to vector<16x1xf32>
    %77 = vector.broadcast %76 : vector<16x1xf32> to vector<16x16xf32>
    %78 = arith.subf %74, %77 : vector<16x16xf32>
    %79 = math.exp %78 : vector<16x16xf32>
    %cst_27 = arith.constant dense<0.000000e+00> : vector<16xf32>
    %80 = vector.multi_reduction <add>, %79, %cst_27 [1] : vector<16x16xf32> to vector<16xf32>
    %81 = vector.shape_cast %80 : vector<16xf32> to vector<16x1xf32>
    %82 = tpu.reciprocal %81 {approx = true} : vector<16x1xf32> -> vector<16x1xf32>
    %83 = vector.broadcast %82 : vector<16x1xf32> to vector<16x16xf32>
    %84 = arith.mulf %79, %83 : vector<16x16xf32>
    %85 = arith.truncf %84 : vector<16x16xf32> to vector<16x16xbf16>
    %cst_28 = arith.constant dense<0.000000e+00> : vector<16x32xf32>
    %86 = tpu.matmul %85, %71, %cst_28 {dimension_numbers = #tpu.dot_dimension_numbers<[1], [0], [0], [1], [0, 0, 1, 1], [], []>} : vector<16x16xbf16>, vector<16x32xbf16>, vector<16x32xf32> -> vector<16x32xf32>
    %87 = arith.truncf %86 : vector<16x32xf32> to vector<16x32xbf16>
    %88 = vector.extract_strided_slice %13 {offsets = [64, 0], sizes = [32, 128], strides = [1, 1]} : vector<128x128xbf16> to vector<32x128xbf16>
    %cst_29 = arith.constant dense<0.000000e+00> : vector<16x128xf32>
    %89 = tpu.matmul %87, %88, %cst_29 {dimension_numbers = #tpu.dot_dimension_numbers<[1], [0], [0], [1], [0, 0, 1, 1], [], []>} : vector<16x32xbf16>, vector<32x128xbf16>, vector<16x128xf32> -> vector<16x128xf32>
    %90 = arith.addf %65, %89 : vector<16x128xf32>
    %91 = vector.extract_strided_slice %10 {offsets = [0, 96], sizes = [16, 32], strides = [1, 1]} : vector<16x384xf32> to vector<16x32xf32>
    %92 = arith.truncf %91 : vector<16x32xf32> to vector<16x32xbf16>
    %93 = vector.extract_strided_slice %10 {offsets = [0, 224], sizes = [16, 32], strides = [1, 1]} : vector<16x384xf32> to vector<16x32xf32>
    %94 = arith.truncf %93 : vector<16x32xf32> to vector<16x32xbf16>
    %95 = vector.extract_strided_slice %10 {offsets = [0, 352], sizes = [16, 32], strides = [1, 1]} : vector<16x384xf32> to vector<16x32xf32>
    %96 = arith.truncf %95 : vector<16x32xf32> to vector<16x32xbf16>
    %cst_30 = arith.constant dense<0.000000e+00> : vector<16x16xf32>
    %97 = tpu.matmul %92, %94, %cst_30 {dimension_numbers = #tpu.dot_dimension_numbers<[1], [1], [0], [0], [0, 0, 1, 0], [], []>} : vector<16x32xbf16>, vector<16x32xbf16>, vector<16x16xf32> -> vector<16x16xf32>
    %98 = vector.broadcast %14 : vector<1x16xf32> to vector<16x16xf32>
    %99 = arith.addf %97, %98 : vector<16x16xf32>
    %cst_31 = arith.constant dense<0xFF800000> : vector<16xf32>
    %100 = vector.multi_reduction <maximumf>, %99, %cst_31 [1] : vector<16x16xf32> to vector<16xf32>
    %101 = vector.shape_cast %100 : vector<16xf32> to vector<16x1xf32>
    %102 = vector.broadcast %101 : vector<16x1xf32> to vector<16x16xf32>
    %103 = arith.subf %99, %102 : vector<16x16xf32>
    %104 = math.exp %103 : vector<16x16xf32>
    %cst_32 = arith.constant dense<0.000000e+00> : vector<16xf32>
    %105 = vector.multi_reduction <add>, %104, %cst_32 [1] : vector<16x16xf32> to vector<16xf32>
    %106 = vector.shape_cast %105 : vector<16xf32> to vector<16x1xf32>
    %107 = tpu.reciprocal %106 {approx = true} : vector<16x1xf32> -> vector<16x1xf32>
    %108 = vector.broadcast %107 : vector<16x1xf32> to vector<16x16xf32>
    %109 = arith.mulf %104, %108 : vector<16x16xf32>
    %110 = arith.truncf %109 : vector<16x16xf32> to vector<16x16xbf16>
    %cst_33 = arith.constant dense<0.000000e+00> : vector<16x32xf32>
    %111 = tpu.matmul %110, %96, %cst_33 {dimension_numbers = #tpu.dot_dimension_numbers<[1], [0], [0], [1], [0, 0, 1, 1], [], []>} : vector<16x16xbf16>, vector<16x32xbf16>, vector<16x32xf32> -> vector<16x32xf32>
    %112 = arith.truncf %111 : vector<16x32xf32> to vector<16x32xbf16>
    %113 = vector.extract_strided_slice %13 {offsets = [96, 0], sizes = [32, 128], strides = [1, 1]} : vector<128x128xbf16> to vector<32x128xbf16>
    %cst_34 = arith.constant dense<0.000000e+00> : vector<16x128xf32>
    %114 = tpu.matmul %112, %113, %cst_34 {dimension_numbers = #tpu.dot_dimension_numbers<[1], [0], [0], [1], [0, 0, 1, 1], [], []>} : vector<16x32xbf16>, vector<32x128xbf16>, vector<16x128xf32> -> vector<16x128xf32>
    %115 = arith.addf %90, %114 : vector<16x128xf32>
    %c0_35 = arith.constant 0 : index
    %c0_36 = arith.constant 0 : index
    %c0_37 = arith.constant 0 : index
    %116 = vector.load %arg9[%c0_35, %c0_36, %c0_37] : memref<1x1x128xf32, #tpu.memory_space<vmem>>, vector<1x1x128xf32>
    %117 = vector.shape_cast %116 : vector<1x1x128xf32> to vector<1x128xf32>
    %118 = vector.broadcast %117 : vector<1x128xf32> to vector<16x128xf32>
    %119 = arith.addf %115, %118 : vector<16x128xf32>
    %120 = arith.extf %3 : vector<16x128xbf16> to vector<16x128xf32>
    %121 = arith.addf %119, %120 : vector<16x128xf32>
    %c0_38 = arith.constant 0 : index
    %c0_39 = arith.constant 0 : index
    %c0_40 = arith.constant 0 : index
    %122 = vector.load %arg10[%c0_38, %c0_39, %c0_40] : memref<1x1x128xf32, #tpu.memory_space<vmem>>, vector<1x1x128xf32>
    %123 = vector.shape_cast %122 : vector<1x1x128xf32> to vector<1x128xf32>
    %c0_41 = arith.constant 0 : index
    %c0_42 = arith.constant 0 : index
    %c0_43 = arith.constant 0 : index
    %124 = vector.load %arg11[%c0_41, %c0_42, %c0_43] : memref<1x1x128xf32, #tpu.memory_space<vmem>>, vector<1x1x128xf32>
    %125 = vector.shape_cast %124 : vector<1x1x128xf32> to vector<1x128xf32>
    %cst_44 = arith.constant dense<0.000000e+00> : vector<16xf32>
    %126 = vector.multi_reduction <add>, %121, %cst_44 [1] : vector<16x128xf32> to vector<16xf32>
    %127 = vector.shape_cast %126 : vector<16xf32> to vector<16x1xf32>
    %cst_45 = arith.constant 1.280000e+02 : f32
    %128 = vector.broadcast %cst_45 : f32 to vector<16x1xf32>
    %129 = arith.divf %127, %128 : vector<16x1xf32>
    %130 = vector.broadcast %129 : vector<16x1xf32> to vector<16x128xf32>
    %131 = arith.subf %121, %130 : vector<16x128xf32>
    %132 = arith.mulf %131, %131 : vector<16x128xf32>
    %cst_46 = arith.constant dense<0.000000e+00> : vector<16xf32>
    %133 = vector.multi_reduction <add>, %132, %cst_46 [1] : vector<16x128xf32> to vector<16xf32>
    %134 = vector.shape_cast %133 : vector<16xf32> to vector<16x1xf32>
    %cst_47 = arith.constant 1.280000e+02 : f32
    %135 = vector.broadcast %cst_47 : f32 to vector<16x1xf32>
    %136 = arith.divf %134, %135 : vector<16x1xf32>
    %cst_48 = arith.constant 9.99999996E-13 : f32
    %137 = vector.broadcast %cst_48 : f32 to vector<16x1xf32>
    %138 = arith.addf %136, %137 : vector<16x1xf32>
    %139 = math.rsqrt %138 : vector<16x1xf32>
    %140 = vector.broadcast %139 : vector<16x1xf32> to vector<16x128xf32>
    %141 = arith.mulf %131, %140 : vector<16x128xf32>
    %142 = vector.broadcast %123 : vector<1x128xf32> to vector<16x128xf32>
    %143 = arith.mulf %141, %142 : vector<16x128xf32>
    %144 = vector.broadcast %125 : vector<1x128xf32> to vector<16x128xf32>
    %145 = arith.addf %143, %144 : vector<16x128xf32>
    %146 = arith.truncf %145 : vector<16x128xf32> to vector<16x128xbf16>
    %c0_49 = arith.constant 0 : index
    %c0_50 = arith.constant 0 : index
    %c0_51 = arith.constant 0 : index
    %147 = vector.load %arg12[%c0_49, %c0_50, %c0_51] : memref<1x128x256xbf16, #tpu.memory_space<vmem>>, vector<1x128x256xbf16>
    %148 = vector.shape_cast %147 : vector<1x128x256xbf16> to vector<128x256xbf16>
    %cst_52 = arith.constant dense<0.000000e+00> : vector<16x256xf32>
    %149 = tpu.matmul %146, %148, %cst_52 {dimension_numbers = #tpu.dot_dimension_numbers<[1], [0], [0], [1], [0, 0, 1, 1], [], []>} : vector<16x128xbf16>, vector<128x256xbf16>, vector<16x256xf32> -> vector<16x256xf32>
    %c0_53 = arith.constant 0 : index
    %c0_54 = arith.constant 0 : index
    %c0_55 = arith.constant 0 : index
    %150 = vector.load %arg13[%c0_53, %c0_54, %c0_55] : memref<1x1x256xf32, #tpu.memory_space<vmem>>, vector<1x1x256xf32>
    %151 = vector.shape_cast %150 : vector<1x1x256xf32> to vector<1x256xf32>
    %152 = vector.broadcast %151 : vector<1x256xf32> to vector<16x256xf32>
    %153 = arith.addf %149, %152 : vector<16x256xf32>
    %cst_56 = arith.constant 5.000000e-01 : f32
    %154 = vector.broadcast %cst_56 : f32 to vector<16x256xf32>
    %155 = arith.mulf %154, %153 : vector<16x256xf32>
    %cst_57 = arith.constant 4.471500e-02 : f32
    %156 = vector.broadcast %cst_57 : f32 to vector<16x256xf32>
    %157 = arith.mulf %156, %153 : vector<16x256xf32>
    %158 = arith.mulf %157, %153 : vector<16x256xf32>
    %159 = arith.mulf %158, %153 : vector<16x256xf32>
    %160 = arith.addf %153, %159 : vector<16x256xf32>
    %cst_58 = arith.constant 0.797884583 : f32
    %161 = vector.broadcast %cst_58 : f32 to vector<16x256xf32>
    %162 = arith.mulf %161, %160 : vector<16x256xf32>
    %163 = math.tanh %162 : vector<16x256xf32>
    %cst_59 = arith.constant 1.000000e+00 : f32
    %164 = vector.broadcast %cst_59 : f32 to vector<16x256xf32>
    %165 = arith.addf %164, %163 : vector<16x256xf32>
    %166 = arith.mulf %155, %165 : vector<16x256xf32>
    %167 = arith.truncf %166 : vector<16x256xf32> to vector<16x256xbf16>
    %c0_60 = arith.constant 0 : index
    %c0_61 = arith.constant 0 : index
    %c0_62 = arith.constant 0 : index
    %168 = vector.load %arg14[%c0_60, %c0_61, %c0_62] : memref<1x256x128xbf16, #tpu.memory_space<vmem>>, vector<1x256x128xbf16>
    %169 = vector.shape_cast %168 : vector<1x256x128xbf16> to vector<256x128xbf16>
    %cst_63 = arith.constant dense<0.000000e+00> : vector<16x128xf32>
    %170 = tpu.matmul %167, %169, %cst_63 {dimension_numbers = #tpu.dot_dimension_numbers<[1], [0], [0], [1], [0, 0, 1, 1], [], []>} : vector<16x256xbf16>, vector<256x128xbf16>, vector<16x128xf32> -> vector<16x128xf32>
    %c0_64 = arith.constant 0 : index
    %c0_65 = arith.constant 0 : index
    %c0_66 = arith.constant 0 : index
    %171 = vector.load %arg15[%c0_64, %c0_65, %c0_66] : memref<1x1x128xf32, #tpu.memory_space<vmem>>, vector<1x1x128xf32>
    %172 = vector.shape_cast %171 : vector<1x1x128xf32> to vector<1x128xf32>
    %173 = vector.broadcast %172 : vector<1x128xf32> to vector<16x128xf32>
    %174 = arith.addf %170, %173 : vector<16x128xf32>
    %175 = arith.addf %174, %145 : vector<16x128xf32>
    %c0_67 = arith.constant 0 : index
    %c0_68 = arith.constant 0 : index
    %c0_69 = arith.constant 0 : index
    %176 = vector.load %arg16[%c0_67, %c0_68, %c0_69] : memref<1x1x128xf32, #tpu.memory_space<vmem>>, vector<1x1x128xf32>
    %177 = vector.shape_cast %176 : vector<1x1x128xf32> to vector<1x128xf32>
    %c0_70 = arith.constant 0 : index
    %c0_71 = arith.constant 0 : index
    %c0_72 = arith.constant 0 : index
    %178 = vector.load %arg17[%c0_70, %c0_71, %c0_72] : memref<1x1x128xf32, #tpu.memory_space<vmem>>, vector<1x1x128xf32>
    %179 = vector.shape_cast %178 : vector<1x1x128xf32> to vector<1x128xf32>
    %cst_73 = arith.constant dense<0.000000e+00> : vector<16xf32>
    %180 = vector.multi_reduction <add>, %175, %cst_73 [1] : vector<16x128xf32> to vector<16xf32>
    %181 = vector.shape_cast %180 : vector<16xf32> to vector<16x1xf32>
    %cst_74 = arith.constant 1.280000e+02 : f32
    %182 = vector.broadcast %cst_74 : f32 to vector<16x1xf32>
    %183 = arith.divf %181, %182 : vector<16x1xf32>
    %184 = vector.broadcast %183 : vector<16x1xf32> to vector<16x128xf32>
    %185 = arith.subf %175, %184 : vector<16x128xf32>
    %186 = arith.mulf %185, %185 : vector<16x128xf32>
    %cst_75 = arith.constant dense<0.000000e+00> : vector<16xf32>
    %187 = vector.multi_reduction <add>, %186, %cst_75 [1] : vector<16x128xf32> to vector<16xf32>
    %188 = vector.shape_cast %187 : vector<16xf32> to vector<16x1xf32>
    %cst_76 = arith.constant 1.280000e+02 : f32
    %189 = vector.broadcast %cst_76 : f32 to vector<16x1xf32>
    %190 = arith.divf %188, %189 : vector<16x1xf32>
    %cst_77 = arith.constant 9.99999996E-13 : f32
    %191 = vector.broadcast %cst_77 : f32 to vector<16x1xf32>
    %192 = arith.addf %190, %191 : vector<16x1xf32>
    %193 = math.rsqrt %192 : vector<16x1xf32>
    %194 = vector.broadcast %193 : vector<16x1xf32> to vector<16x128xf32>
    %195 = arith.mulf %185, %194 : vector<16x128xf32>
    %196 = vector.broadcast %177 : vector<1x128xf32> to vector<16x128xf32>
    %197 = arith.mulf %195, %196 : vector<16x128xf32>
    %198 = vector.broadcast %179 : vector<1x128xf32> to vector<16x128xf32>
    %199 = arith.addf %197, %198 : vector<16x128xf32>
    %200 = arith.truncf %199 : vector<16x128xf32> to vector<16x128xbf16>
    %c0_78 = arith.constant 0 : index
    %c0_79 = arith.constant 0 : index
    %201 = vector.load %arg21[%c0_78, %c0_79] : memref<16x128xbf16, #tpu.memory_space<vmem>>, vector<16x128xbf16>
    tpu.vector_store %arg21[%c0_78, %c0_79], %200 {strides = array<i32>} : memref<16x128xbf16, #tpu.memory_space<vmem>>, vector<16x128xbf16>,
    %c1_i32 = arith.constant 1 : i32
    %202 = arith.cmpi eq, %arg1, %c1_i32 : i32
    %203 = arith.extui %202 : i1 to i32
    %c0_i32_80 = arith.constant 0 : i32
    %204 = arith.cmpi ne, %203, %c0_i32_80 : i32
    scf.if %204 {
      %205 = vector.shape_cast %199 : vector<16x128xf32> to vector<1x16x128xf32>
      %cst_81 = arith.constant dense<0.000000e+00> : vector<1x128xf32>
      %206 = vector.multi_reduction <add>, %205, %cst_81 [1] : vector<1x16x128xf32> to vector<1x128xf32>
      %cst_82 = arith.constant 6.250000e-02 : f32
      %207 = vector.broadcast %cst_82 : f32 to vector<1x128xf32>
      %208 = arith.mulf %206, %207 : vector<1x128xf32>
      %209 = arith.truncf %208 : vector<1x128xf32> to vector<1x128xbf16>
      %c0_83 = arith.constant 0 : index
      %c0_84 = arith.constant 0 : index
      %210 = vector.load %arg18[%c0_83, %c0_84] : memref<128x128xbf16, #tpu.memory_space<vmem>>, vector<128x128xbf16>
      %cst_85 = arith.constant dense<0.000000e+00> : vector<1x128xf32>
      %211 = tpu.matmul %209, %210, %cst_85 {dimension_numbers = #tpu.dot_dimension_numbers<[1], [0], [0], [1], [0, 0, 1, 1], [], []>} : vector<1x128xbf16>, vector<128x128xbf16>, vector<1x128xf32> -> vector<1x128xf32>
      %c0_86 = arith.constant 0 : index
      %c0_87 = arith.constant 0 : index
      %212 = vector.load %arg19[%c0_86, %c0_87] : memref<1x128xf32, #tpu.memory_space<vmem>>, vector<1x128xf32>
      %213 = arith.addf %211, %212 : vector<1x128xf32>
      %214 = vector.shape_cast %213 : vector<1x128xf32> to vector<1x1x128xf32>
      %c0_88 = arith.constant 0 : index
      %c0_89 = arith.constant 0 : index
      %c0_90 = arith.constant 0 : index
      %215 = vector.load %arg20[%c0_88, %c0_89, %c0_90] : memref<1x1x128xf32, #tpu.memory_space<vmem>>, vector<1x1x128xf32>
      tpu.vector_store %arg20[%c0_88, %c0_89, %c0_90], %214 {strides = array<i32>} : memref<1x1x128xf32, #tpu.memory_space<vmem>>, vector<1x1x128xf32>,
    } else {
    }
    return
  }
  func.func @transform_0(%arg0: i32, %arg1: i32) -> (i32, i32, i32) {
    %c0_i32 = arith.constant 0 : i32
    %c0_i32_0 = arith.constant 0 : i32
    %c0_i32_1 = arith.constant 0 : i32
    return %arg0, %c0_i32, %c0_i32_0 : i32, i32, i32
  }
  func.func @transform_1(%arg0: i32, %arg1: i32) -> (i32, i32, i32) {
    %c0_i32 = arith.constant 0 : i32
    %c0_i32_0 = arith.constant 0 : i32
    %c0_i32_1 = arith.constant 0 : i32
    return %arg0, %c0_i32, %c0_i32_0 : i32, i32, i32
  }
  func.func @transform_2(%arg0: i32, %arg1: i32) -> (i32, i32) {
    %c0_i32 = arith.constant 0 : i32
    %c0_i32_0 = arith.constant 0 : i32
    %c0_i32_1 = arith.constant 0 : i32
    return %c0_i32, %c0_i32_0 : i32, i32
  }
  func.func @transform_3(%arg0: i32, %arg1: i32) -> (i32, i32) {
    %c0_i32 = arith.constant 0 : i32
    %c0_i32_0 = arith.constant 0 : i32
    %c0_i32_1 = arith.constant 0 : i32
    return %c0_i32, %c0_i32_0 : i32, i32
  }
  func.func @transform_4(%arg0: i32, %arg1: i32) -> (i32, i32, i32) {
    %c0_i32 = arith.constant 0 : i32
    %c0_i32_0 = arith.constant 0 : i32
    %c0_i32_1 = arith.constant 0 : i32
    return %arg1, %c0_i32, %c0_i32_0 : i32, i32, i32
  }
  func.func @transform_5(%arg0: i32, %arg1: i32) -> (i32, i32, i32) {
    %c0_i32 = arith.constant 0 : i32
    %c0_i32_0 = arith.constant 0 : i32
    %c0_i32_1 = arith.constant 0 : i32
    return %arg1, %c0_i32, %c0_i32_0 : i32, i32, i32
  }
  func.func @transform_6(%arg0: i32, %arg1: i32) -> (i32, i32, i32) {
    %c0_i32 = arith.constant 0 : i32
    %c0_i32_0 = arith.constant 0 : i32
    %c0_i32_1 = arith.constant 0 : i32
    return %arg1, %c0_i32, %c0_i32_0 : i32, i32, i32
  }
  func.func @transform_7(%arg0: i32, %arg1: i32) -> (i32, i32, i32) {
    %c0_i32 = arith.constant 0 : i32
    %c0_i32_0 = arith.constant 0 : i32
    %c0_i32_1 = arith.constant 0 : i32
    return %arg1, %c0_i32, %c0_i32_0 : i32, i32, i32
  }
  func.func @transform_8(%arg0: i32, %arg1: i32) -> (i32, i32, i32) {
    %c0_i32 = arith.constant 0 : i32
    %c0_i32_0 = arith.constant 0 : i32
    %c0_i32_1 = arith.constant 0 : i32
    return %arg1, %c0_i32, %c0_i32_0 : i32, i32, i32
  }
  func.func @transform_9(%arg0: i32, %arg1: i32) -> (i32, i32, i32) {
    %c0_i32 = arith.constant 0 : i32
    %c0_i32_0 = arith.constant 0 : i32
    %c0_i32_1 = arith.constant 0 : i32
    return %arg1, %c0_i32, %c0_i32_0 : i32, i32, i32
  }
  func.func @transform_10(%arg0: i32, %arg1: i32) -> (i32, i32, i32) {
    %c0_i32 = arith.constant 0 : i32
    %c0_i32_0 = arith.constant 0 : i32
    %c0_i32_1 = arith.constant 0 : i32
    return %arg1, %c0_i32, %c0_i32_0 : i32, i32, i32
  }
  func.func @transform_11(%arg0: i32, %arg1: i32) -> (i32, i32, i32) {
    %c0_i32 = arith.constant 0 : i32
    %c0_i32_0 = arith.constant 0 : i32
    %c0_i32_1 = arith.constant 0 : i32
    return %arg1, %c0_i32, %c0_i32_0 : i32, i32, i32
  }
  func.func @transform_12(%arg0: i32, %arg1: i32) -> (i32, i32, i32) {
    %c0_i32 = arith.constant 0 : i32
    %c0_i32_0 = arith.constant 0 : i32
    %c0_i32_1 = arith.constant 0 : i32
    return %arg1, %c0_i32, %c0_i32_0 : i32, i32, i32
  }
  func.func @transform_13(%arg0: i32, %arg1: i32) -> (i32, i32, i32) {
    %c0_i32 = arith.constant 0 : i32
    %c0_i32_0 = arith.constant 0 : i32
    %c0_i32_1 = arith.constant 0 : i32
    return %arg1, %c0_i32, %c0_i32_0 : i32, i32, i32
  }
  func.func @transform_14(%arg0: i32, %arg1: i32) -> (i32, i32, i32) {
    %c0_i32 = arith.constant 0 : i32
    %c0_i32_0 = arith.constant 0 : i32
    %c0_i32_1 = arith.constant 0 : i32
    return %arg1, %c0_i32, %c0_i32_0 : i32, i32, i32
  }
  func.func @transform_15(%arg0: i32, %arg1: i32) -> (i32, i32, i32) {
    %c0_i32 = arith.constant 0 : i32
    %c0_i32_0 = arith.constant 0 : i32
    %c0_i32_1 = arith.constant 0 : i32
    return %arg1, %c0_i32, %c0_i32_0 : i32, i32, i32
  }
  func.func @transform_16(%arg0: i32, %arg1: i32) -> (i32, i32) {
    %c0_i32 = arith.constant 0 : i32
    %c0_i32_0 = arith.constant 0 : i32
    %c0_i32_1 = arith.constant 0 : i32
    return %c0_i32, %c0_i32_0 : i32, i32
  }
  func.func @transform_17(%arg0: i32, %arg1: i32) -> (i32, i32) {
    %c0_i32 = arith.constant 0 : i32
    %c0_i32_0 = arith.constant 0 : i32
    %c0_i32_1 = arith.constant 0 : i32
    return %c0_i32, %c0_i32_0 : i32, i32
  }
  func.func @transform_18(%arg0: i32, %arg1: i32) -> (i32, i32, i32) {
    %c0_i32 = arith.constant 0 : i32
    %c0_i32_0 = arith.constant 0 : i32
    %c0_i32_1 = arith.constant 0 : i32
    return %arg0, %c0_i32, %c0_i32_0 : i32, i32, i32
  }
}

</mosaic_0001>

<llo_original>
// kernel: student_forward.1
$region0: #{student_forward.1}
  #allocation0 [shape = 'u32[]', space=smem, size = 0x4, offset = 0x4, fixed_abs, tag = 'smem constant byte address 0x4 - core index']
  #allocation1 [shape = 'u32[144,128]{1,0:T(1,128)}', space=vmem, size = 0x12000, scoped, tag = 'internal scratch']
  #allocation2 [shape = 'bf16[16,128]{1,0:T(8,128)(2,1)}', space=vmem, size = 0x1000, scoped, tag = 'scratch operand']
  %s0 = inlined_call_operand.vmem [shape: bf16[2,16,128], index: 0, kind: input, shape index: {}]
  %s1 = inlined_call_operand.vmem [shape: f32[2,1,16], index: 1, kind: input, shape index: {}]
  %s2 = inlined_call_operand.vmem [shape: f32[1,128], index: 2, kind: input, shape index: {}]
  %s3 = inlined_call_operand.vmem [shape: f32[1,128], index: 3, kind: input, shape index: {}]
  %s4 = inlined_call_operand.hbm [shape: bf16[2,128,384], index: 4, kind: input, shape index: {}]
  %s5 = inlined_call_operand.vmem [shape: f32[2,1,384], index: 5, kind: input, shape index: {}]
  %s6 = inlined_call_operand.vmem [shape: bf16[2,128,128], index: 6, kind: input, shape index: {}]
  %s7 = inlined_call_operand.vmem [shape: f32[2,1,128], index: 7, kind: input, shape index: {}]
  %s8 = inlined_call_operand.vmem [shape: f32[2,1,128], index: 8, kind: input, shape index: {}]
  %s9 = inlined_call_operand.vmem [shape: f32[2,1,128], index: 9, kind: input, shape index: {}]
  %s10 = inlined_call_operand.hbm [shape: bf16[2,128,256], index: 10, kind: input, shape index: {}]
  %s11 = inlined_call_operand.vmem [shape: f32[2,1,256], index: 11, kind: input, shape index: {}]
  %s12 = inlined_call_operand.hbm [shape: bf16[2,256,128], index: 12, kind: input, shape index: {}]
  %s13 = inlined_call_operand.vmem [shape: f32[2,1,128], index: 13, kind: input, shape index: {}]
  %s14 = inlined_call_operand.vmem [shape: f32[2,1,128], index: 14, kind: input, shape index: {}]
  %s15 = inlined_call_operand.vmem [shape: f32[2,1,128], index: 15, kind: input, shape index: {}]
  %s16 = inlined_call_operand.vmem [shape: bf16[128,128], index: 16, kind: input, shape index: {}]
  %s17 = inlined_call_operand.hbm [shape: f32[1,128], index: 17, kind: input, shape index: {}]
  %s18 = inlined_call_operand.hbm [shape: f32[2,1,128], index: 18, kind: output, shape index: {}]
  %s19 = sld [smem:[#allocation0]]
  $region129: #{student_forward.1} parent=0
    _
  %s21 = ssub.s32 1, %s19
  %s22 = scalar_select 0, %s21, %s19
  $region1: #{student_forward.1} parent=0
    #allocation3 [shape = 'u8[196608]{0}', space=vmem, size = 0x30000, scoped, tag = 'input window, operand 4']
    #allocation4 [shape = 's32[2]{0}', space=sflag, size = 0x8, scoped, tag = 'scoped memory for student_forward.1']
    #allocation5 [shape = 's32[2]{0}', space=sflag, size = 0x8, scoped, tag = 'scoped memory for student_forward.1']
    #allocation6 [shape = 'u8[131072]{0}', space=vmem, size = 0x20000, scoped, tag = 'input window, operand 10']
    #allocation7 [shape = 's32[2]{0}', space=sflag, size = 0x8, scoped, tag = 'scoped memory for student_forward.1']
    #allocation8 [shape = 'u8[131072]{0}', space=vmem, size = 0x20000, scoped, tag = 'input window, operand 12']
    #allocation9 [shape = 'u8[512]{0}', space=vmem, size = 0x400, scoped, tag = 'input window, operand 17, single buffered']
    #allocation10 [shape = 's32[1]{0}', space=sflag, size = 0x4, scoped, tag = 'scoped memory for student_forward.1']
    #allocation11 [shape = 'u8[1024]{0}', space=vmem, size = 0x400, scoped, tag = 'output window, operand 0']
    %23 = vsyncpa [#allocation4], 0
    %s24 = scalar_lea.sflag [#allocation4], 1
    %25 = vsyncpa %s24, 0
    %26 = vsyncpa [#allocation7], 0
    %s27 = scalar_lea.sflag [#allocation7], 1
    %28 = vsyncpa %s27, 0
    %29 = vsyncpa [#allocation10], 0
    %30 = vsyncpa [#allocation5], 0
    %s31 = scalar_lea.sflag [#allocation5], 1
    %32 = vsyncpa %s31, 0
    loop: start=0, step=1, limit=6
    $region2: #{student_forward.1} parent=1 // loop_pre_header
      _
    $region3: #{student_forward.1} parent=1 // loop_header
      %s34 = sphi 0, %s38
      %p35 = scmp.ge.s32.totalorder %s34, 6
      %s41 = sphi 0, %s53
      %s42 = sphi 0, %s49
      %s43 = sphi 0, %s41
      %s44 = sphi 0, %s42
      %s45 = sphi 0, %s43
      %s46 = sphi 0, %s44
      %s56 = sphi 0, %s58
      %s59 = sphi 0, %s56
      %s60 = sphi 0, %s59
      %s76 = sphi 0, %s60
      %s82 = sphi 0, %s84
      %s85 = sphi 0, %s82
      %s86 = sphi 0, %s85
      %s102 = sphi 0, %s86
      %s106 = sphi 0, %s106
      %s108 = sphi 0, %s106
      %s109 = sphi 0, %s108
      %s123 = sphi 0, %s109
      %s127 = sphi 0, %s127
      %s129 = sphi 0, %s127
      %s130 = sphi 0, %s129
      %s144 = sphi 0, %s130
      %s150 = sphi 0, %s152
      %s153 = sphi 0, %s150
      %s154 = sphi 0, %s153
      %s170 = sphi 0, %s154
      %s176 = sphi 0, %s178
      %s179 = sphi 0, %s176
      %s180 = sphi 0, %s179
      %s196 = sphi 0, %s180
      %s202 = sphi 0, %s204
      %s205 = sphi 0, %s202
      %s206 = sphi 0, %s205
      %s222 = sphi 0, %s206
      %s228 = sphi 0, %s230
      %s231 = sphi 0, %s228
      %s232 = sphi 0, %s231
      %s248 = sphi 0, %s232
      %s254 = sphi 0, %s256
      %s257 = sphi 0, %s254
      %s258 = sphi 0, %s257
      %s274 = sphi 0, %s258
      %s280 = sphi 0, %s282
      %s283 = sphi 0, %s280
      %s284 = sphi 0, %s283
      %s300 = sphi 0, %s284
      %s306 = sphi 0, %s308
      %s309 = sphi 0, %s306
      %s310 = sphi 0, %s309
      %s326 = sphi 0, %s310
      %s332 = sphi 0, %s334
      %s335 = sphi 0, %s332
      %s336 = sphi 0, %s335
      %s352 = sphi 0, %s336
      %s358 = sphi 0, %s360
      %s361 = sphi 0, %s358
      %s362 = sphi 0, %s361
      %s378 = sphi 0, %s362
      %s384 = sphi 0, %s386
      %s387 = sphi 0, %s384
      %s388 = sphi 0, %s387
      %s404 = sphi 0, %s388
      %s410 = sphi 0, %s412
      %s413 = sphi 0, %s410
      %s414 = sphi 0, %s413
      %s430 = sphi 0, %s414
      %s436 = sphi 0, %s438
      %s439 = sphi 0, %s436
      %s440 = sphi 0, %s439
      %s456 = sphi 0, %s440
      %s460 = sphi 0, %s460
      %s462 = sphi 0, %s460
      %s463 = sphi 0, %s462
      %s477 = sphi 0, %s463
      %s481 = sphi 0, %s481
      %s483 = sphi 0, %s481
      %s484 = sphi 0, %s483
      %s498 = sphi 0, %s484
      %s504 = sphi 0, %s506
      %s507 = sphi 0, %s504
      %s508 = sphi 0, %s507
      %s524 = sphi 0, %s508
    $region4: #{student_forward.1} parent=1 // loop_header_branch
      %37 = sbr.rel (%p35) target = $region8
    $region5: #{student_forward.1} parent=1 // loop_body
      %s39 = ssub.s32 %s34, 1
      %s40 = ssub.s32 %s34, 2
      %s47 = sadd.s32 1, %s42
      %p48 = scmp.ge.s32.totalorder %s47, 2
      %s49 = scalar_select %p48, 0, %s47
      %s50 = sadd.s32 1, %s41
      %s51 = scalar_select %p48, %s50, %s41
      %p52 = scmp.ge.s32.totalorder %s51, 2
      %s53 = scalar_select %p52, 0, %s51
      %s54 = ssub.s32 %s41, %s53
      %p55 = scmp.eq.s32.totalorder %s54, 0
      %s57 = sadd.s32 %s56, 1
      %s58 = scalar_select %p55, %s56, %s57
      %p61 = pneg %p55
      %p62 = scmp.eq.s32.totalorder %s34, 3
      %p63 = por %p61, %p62
      %p64 = scmp.ne.s32.totalorder %s56, %s59
      %p65 = scmp.eq.s32.totalorder %s34, 0
      %p66 = por %p64, %p65
      %p67 = scmp.ne.s32.totalorder %s56, %s59
      %p68 = scmp.eq.s32.totalorder %s39, 3
      %p69 = por %p67, %p68
      %p70 = scmp.ne.s32.totalorder %s59, %s60
      %p71 = scmp.eq.s32.totalorder %s39, 0
      %p72 = por %p70, %p71
      %p73 = scmp.ne.s32.totalorder %s59, %s60
      %p74 = scmp.eq.s32.totalorder %s40, 3
      %p75 = por %p73, %p74
      %p77 = scmp.ne.s32.totalorder %s60, %s76
      %p78 = scmp.eq.s32.totalorder %s40, 0
      %p79 = por %p77, %p78
      %s80 = ssub.s32 %s41, %s53
      %p81 = scmp.eq.s32.totalorder %s80, 0
      %s83 = sadd.s32 %s82, 1
      %s84 = scalar_select %p81, %s82, %s83
      %p87 = pneg %p81
      %p88 = scmp.eq.s32.totalorder %s34, 3
      %p89 = por %p87, %p88
      %p90 = scmp.ne.s32.totalorder %s82, %s85
      %p91 = scmp.eq.s32.totalorder %s34, 0
      %p92 = por %p90, %p91
      %p93 = scmp.ne.s32.totalorder %s82, %s85
      %p94 = scmp.eq.s32.totalorder %s39, 3
      %p95 = por %p93, %p94
      %p96 = scmp.ne.s32.totalorder %s85, %s86
      %p97 = scmp.eq.s32.totalorder %s39, 0
      %p98 = por %p96, %p97
      %p99 = scmp.ne.s32.totalorder %s85, %s86
      %p100 = scmp.eq.s32.totalorder %s40, 3
      %p101 = por %p99, %p100
      %p103 = scmp.ne.s32.totalorder %s86, %s102
      %p104 = scmp.eq.s32.totalorder %s40, 0
      %p105 = por %p103, %p104
      %s107 = sadd.s32 %s106, 1
      %p110 = scmp.eq.s32.totalorder %s34, 3
      %p111 = scmp.ne.s32.totalorder %s106, %s108
      %p112 = scmp.eq.s32.totalorder %s34, 0
      %p113 = por %p111, %p112
      %p114 = scmp.ne.s32.totalorder %s106, %s108
      %p115 = scmp.eq.s32.totalorder %s39, 3
      %p116 = por %p114, %p115
      %p117 = scmp.ne.s32.totalorder %s108, %s109
      %p118 = scmp.eq.s32.totalorder %s39, 0
      %p119 = por %p117, %p118
      %p120 = scmp.ne.s32.totalorder %s108, %s109
      %p121 = scmp.eq.s32.totalorder %s40, 3
      %p122 = por %p120, %p121
      %p124 = scmp.ne.s32.totalorder %s109, %s123
      %p125 = scmp.eq.s32.totalorder %s40, 0
      %p126 = por %p124, %p125
      %s128 = sadd.s32 %s127, 1
      %p131 = scmp.eq.s32.totalorder %s34, 3
      %p132 = scmp.ne.s32.totalorder %s127, %s129
      %p133 = scmp.eq.s32.totalorder %s34, 0
      %p134 = por %p132, %p133
      %p135 = scmp.ne.s32.totalorder %s127, %s129
      %p136 = scmp.eq.s32.totalorder %s39, 3
      %p137 = por %p135, %p136
      %p138 = scmp.ne.s32.totalorder %s129, %s130
      %p139 = scmp.eq.s32.totalorder %s39, 0
      %p140 = por %p138, %p139
      %p141 = scmp.ne.s32.totalorder %s129, %s130
      %p142 = scmp.eq.s32.totalorder %s40, 3
      %p143 = por %p141, %p142
      %p145 = scmp.ne.s32.totalorder %s130, %s144
      %p146 = scmp.eq.s32.totalorder %s40, 0
      %p147 = por %p145, %p146
      %s148 = ssub.s32 %s42, %s49
      %p149 = scmp.eq.s32.totalorder %s148, 0
      %s151 = sadd.s32 %s150, 1
      %s152 = scalar_select %p149, %s150, %s151
      %p155 = pneg %p149
      %p156 = scmp.eq.s32.totalorder %s34, 3
      %p157 = por %p155, %p156
      %p158 = scmp.ne.s32.totalorder %s150, %s153
      %p159 = scmp.eq.s32.totalorder %s34, 0
      %p160 = por %p158, %p159
      %p161 = scmp.ne.s32.totalorder %s150, %s153
      %p162 = scmp.eq.s32.totalorder %s39, 3
      %p163 = por %p161, %p162
      %p164 = scmp.ne.s32.totalorder %s153, %s154
      %p165 = scmp.eq.s32.totalorder %s39, 0
      %p166 = por %p164, %p165
      %p167 = scmp.ne.s32.totalorder %s153, %s154
      %p168 = scmp.eq.s32.totalorder %s40, 3
      %p169 = por %p167, %p168
      %p171 = scmp.ne.s32.totalorder %s154, %s170
      %p172 = scmp.eq.s32.totalorder %s40, 0
      %p173 = por %p171, %p172
      %s174 = ssub.s32 %s42, %s49
      %p175 = scmp.eq.s32.totalorder %s174, 0
      %s177 = sadd.s32 %s176, 1
      %s178 = scalar_select %p175, %s176, %s177
      %p181 = pneg %p175
      %p182 = scmp.eq.s32.totalorder %s34, 3
      %p183 = por %p181, %p182
      %p184 = scmp.ne.s32.totalorder %s176, %s179
      %p185 = scmp.eq.s32.totalorder %s34, 0
      %p186 = por %p184, %p185
      %p187 = scmp.ne.s32.totalorder %s176, %s179
      %p188 = scmp.eq.s32.totalorder %s39, 3
      %p189 = por %p187, %p188
      %p190 = scmp.ne.s32.totalorder %s179, %s180
      %p191 = scmp.eq.s32.totalorder %s39, 0
      %p192 = por %p190, %p191
      %p193 = scmp.ne.s32.totalorder %s179, %s180
      %p194 = scmp.eq.s32.totalorder %s40, 3
      %p195 = por %p193, %p194
      %p197 = scmp.ne.s32.totalorder %s180, %s196
      %p198 = scmp.eq.s32.totalorder %s40, 0
      %p199 = por %p197, %p198
      %s200 = ssub.s32 %s42, %s49
      %p201 = scmp.eq.s32.totalorder %s200, 0
      %s203 = sadd.s32 %s202, 1
      %s204 = scalar_select %p201, %s202, %s203
      %p207 = pneg %p201
      %p208 = scmp.eq.s32.totalorder %s34, 3
      %p209 = por %p207, %p208
      %p210 = scmp.ne.s32.totalorder %s202, %s205
      %p211 = scmp.eq.s32.totalorder %s34, 0
      %p212 = por %p210, %p211
      %p213 = scmp.ne.s32.totalorder %s202, %s205
      %p214 = scmp.eq.s32.totalorder %s39, 3
      %p215 = por %p213, %p214
      %p216 = scmp.ne.s32.totalorder %s205, %s206
      %p217 = scmp.eq.s32.totalorder %s39, 0
      %p218 = por %p216, %p217
      %p219 = scmp.ne.s32.totalorder %s205, %s206
      %p220 = scmp.eq.s32.totalorder %s40, 3
      %p221 = por %p219, %p220
      %p223 = scmp.ne.s32.totalorder %s206, %s222
      %p224 = scmp.eq.s32.totalorder %s40, 0
      %p225 = por %p223, %p224
      %s226 = ssub.s32 %s42, %s49
      %p227 = scmp.eq.s32.totalorder %s226, 0
      %s229 = sadd.s32 %s228, 1
      %s230 = scalar_select %p227, %s228, %s229
      %p233 = pneg %p227
      %p234 = scmp.eq.s32.totalorder %s34, 3
      %p235 = por %p233, %p234
      %p236 = scmp.ne.s32.totalorder %s228, %s231
      %p237 = scmp.eq.s32.totalorder %s34, 0
      %p238 = por %p236, %p237
      %p239 = scmp.ne.s32.totalorder %s228, %s231
      %p240 = scmp.eq.s32.totalorder %s39, 3
      %p241 = por %p239, %p240
      %p242 = scmp.ne.s32.totalorder %s231, %s232
      %p243 = scmp.eq.s32.totalorder %s39, 0
      %p244 = por %p242, %p243
      %p245 = scmp.ne.s32.totalorder %s231, %s232
      %p246 = scmp.eq.s32.totalorder %s40, 3
      %p247 = por %p245, %p246
      %p249 = scmp.ne.s32.totalorder %s232, %s248
      %p250 = scmp.eq.s32.totalorder %s40, 0
      %p251 = por %p249, %p250
      %s252 = ssub.s32 %s42, %s49
      %p253 = scmp.eq.s32.totalorder %s252, 0
      %s255 = sadd.s32 %s254, 1
      %s256 = scalar_select %p253, %s254, %s255
      %p259 = pneg %p253
      %p260 = scmp.eq.s32.totalorder %s34, 3
      %p261 = por %p259, %p260
      %p262 = scmp.ne.s32.totalorder %s254, %s257
      %p263 = scmp.eq.s32.totalorder %s34, 0
      %p264 = por %p262, %p263
      %p265 = scmp.ne.s32.totalorder %s254, %s257
      %p266 = scmp.eq.s32.totalorder %s39, 3
      %p267 = por %p265, %p266
      %p268 = scmp.ne.s32.totalorder %s257, %s258
      %p269 = scmp.eq.s32.totalorder %s39, 0
      %p270 = por %p268, %p269
      %p271 = scmp.ne.s32.totalorder %s257, %s258
      %p272 = scmp.eq.s32.totalorder %s40, 3
      %p273 = por %p271, %p272
      %p275 = scmp.ne.s32.totalorder %s258, %s274
      %p276 = scmp.eq.s32.totalorder %s40, 0
      %p277 = por %p275, %p276
      %s278 = ssub.s32 %s42, %s49
      %p279 = scmp.eq.s32.totalorder %s278, 0
      %s281 = sadd.s32 %s280, 1
      %s282 = scalar_select %p279, %s280, %s281
      %p285 = pneg %p279
      %p286 = scmp.eq.s32.totalorder %s34, 3
      %p287 = por %p285, %p286
      %p288 = scmp.ne.s32.totalorder %s280, %s283
      %p289 = scmp.eq.s32.totalorder %s34, 0
      %p290 = por %p288, %p289
      %p291 = scmp.ne.s32.totalorder %s280, %s283
      %p292 = scmp.eq.s32.totalorder %s39, 3
      %p293 = por %p291, %p292
      %p294 = scmp.ne.s32.totalorder %s283, %s284
      %p295 = scmp.eq.s32.totalorder %s39, 0
      %p296 = por %p294, %p295
      %p297 = scmp.ne.s32.totalorder %s283, %s284
      %p298 = scmp.eq.s32.totalorder %s40, 3
      %p299 = por %p297, %p298
      %p301 = scmp.ne.s32.totalorder %s284, %s300
      %p302 = scmp.eq.s32.totalorder %s40, 0
      %p303 = por %p301, %p302
      %s304 = ssub.s32 %s42, %s49
      %p305 = scmp.eq.s32.totalorder %s304, 0
      %s307 = sadd.s32 %s306, 1
      %s308 = scalar_select %p305, %s306, %s307
      %p311 = pneg %p305
      %p312 = scmp.eq.s32.totalorder %s34, 3
      %p313 = por %p311, %p312
      %p314 = scmp.ne.s32.totalorder %s306, %s309
      %p315 = scmp.eq.s32.totalorder %s34, 0
      %p316 = por %p314, %p315
      %p317 = scmp.ne.s32.totalorder %s306, %s309
      %p318 = scmp.eq.s32.totalorder %s39, 3
      %p319 = por %p317, %p318
      %p320 = scmp.ne.s32.totalorder %s309, %s310
      %p321 = scmp.eq.s32.totalorder %s39, 0
      %p322 = por %p320, %p321
      %p323 = scmp.ne.s32.totalorder %s309, %s310
      %p324 = scmp.eq.s32.totalorder %s40, 3
      %p325 = por %p323, %p324
      %p327 = scmp.ne.s32.totalorder %s310, %s326
      %p328 = scmp.eq.s32.totalorder %s40, 0
      %p329 = por %p327, %p328
      %s330 = ssub.s32 %s42, %s49
      %p331 = scmp.eq.s32.totalorder %s330, 0
      %s333 = sadd.s32 %s332, 1
      %s334 = scalar_select %p331, %s332, %s333
      %p337 = pneg %p331
      %p338 = scmp.eq.s32.totalorder %s34, 3
      %p339 = por %p337, %p338
      %p340 = scmp.ne.s32.totalorder %s332, %s335
      %p341 = scmp.eq.s32.totalorder %s34, 0
      %p342 = por %p340, %p341
      %p343 = scmp.ne.s32.totalorder %s332, %s335
      %p344 = scmp.eq.s32.totalorder %s39, 3
      %p345 = por %p343, %p344
      %p346 = scmp.ne.s32.totalorder %s335, %s336
      %p347 = scmp.eq.s32.totalorder %s39, 0
      %p348 = por %p346, %p347
      %p349 = scmp.ne.s32.totalorder %s335, %s336
      %p350 = scmp.eq.s32.totalorder %s40, 3
      %p351 = por %p349, %p350
      %p353 = scmp.ne.s32.totalorder %s336, %s352
      %p354 = scmp.eq.s32.totalorder %s40, 0
      %p355 = por %p353, %p354
      %s356 = ssub.s32 %s42, %s49
      %p357 = scmp.eq.s32.totalorder %s356, 0
      %s359 = sadd.s32 %s358, 1
      %s360 = scalar_select %p357, %s358, %s359
      %p363 = pneg %p357
      %p364 = scmp.eq.s32.totalorder %s34, 3
      %p365 = por %p363, %p364
      %p366 = scmp.ne.s32.totalorder %s358, %s361
      %p367 = scmp.eq.s32.totalorder %s34, 0
      %p368 = por %p366, %p367
      %p369 = scmp.ne.s32.totalorder %s358, %s361
      %p370 = scmp.eq.s32.totalorder %s39, 3
      %p371 = por %p369, %p370
      %p372 = scmp.ne.s32.totalorder %s361, %s362
      %p373 = scmp.eq.s32.totalorder %s39, 0
      %p374 = por %p372, %p373
      %p375 = scmp.ne.s32.totalorder %s361, %s362
      %p376 = scmp.eq.s32.totalorder %s40, 3
      %p377 = por %p375, %p376
      %p379 = scmp.ne.s32.totalorder %s362, %s378
      %p380 = scmp.eq.s32.totalorder %s40, 0
      %p381 = por %p379, %p380
      %s382 = ssub.s32 %s42, %s49
      %p383 = scmp.eq.s32.totalorder %s382, 0
      %s385 = sadd.s32 %s384, 1
      %s386 = scalar_select %p383, %s384, %s385
      %p389 = pneg %p383
      %p390 = scmp.eq.s32.totalorder %s34, 3
      %p391 = por %p389, %p390
      %p392 = scmp.ne.s32.totalorder %s384, %s387
      %p393 = scmp.eq.s32.totalorder %s34, 0
      %p394 = por %p392, %p393
      %p395 = scmp.ne.s32.totalorder %s384, %s387
      %p396 = scmp.eq.s32.totalorder %s39, 3
      %p397 = por %p395, %p396
      %p398 = scmp.ne.s32.totalorder %s387, %s388
      %p399 = scmp.eq.s32.totalorder %s39, 0
      %p400 = por %p398, %p399
      %p401 = scmp.ne.s32.totalorder %s387, %s388
      %p402 = scmp.eq.s32.totalorder %s40, 3
      %p403 = por %p401, %p402
      %p405 = scmp.ne.s32.totalorder %s388, %s404
      %p406 = scmp.eq.s32.totalorder %s40, 0
      %p407 = por %p405, %p406
      %s408 = ssub.s32 %s42, %s49
      %p409 = scmp.eq.s32.totalorder %s408, 0
      %s411 = sadd.s32 %s410, 1
      %s412 = scalar_select %p409, %s410, %s411
      %p415 = pneg %p409
      %p416 = scmp.eq.s32.totalorder %s34, 3
      %p417 = por %p415, %p416
      %p418 = scmp.ne.s32.totalorder %s410, %s413
      %p419 = scmp.eq.s32.totalorder %s34, 0
      %p420 = por %p418, %p419
      %p421 = scmp.ne.s32.totalorder %s410, %s413
      %p422 = scmp.eq.s32.totalorder %s39, 3
      %p423 = por %p421, %p422
      %p424 = scmp.ne.s32.totalorder %s413, %s414
      %p425 = scmp.eq.s32.totalorder %s39, 0
      %p426 = por %p424, %p425
      %p427 = scmp.ne.s32.totalorder %s413, %s414
      %p428 = scmp.eq.s32.totalorder %s40, 3
      %p429 = por %p427, %p428
      %p431 = scmp.ne.s32.totalorder %s414, %s430
      %p432 = scmp.eq.s32.totalorder %s40, 0
      %p433 = por %p431, %p432
      %s434 = ssub.s32 %s42, %s49
      %p435 = scmp.eq.s32.totalorder %s434, 0
      %s437 = sadd.s32 %s436, 1
      %s438 = scalar_select %p435, %s436, %s437
      %p441 = pneg %p435
      %p442 = scmp.eq.s32.totalorder %s34, 3
      %p443 = por %p441, %p442
      %p444 = scmp.ne.s32.totalorder %s436, %s439
      %p445 = scmp.eq.s32.totalorder %s34, 0
      %p446 = por %p444, %p445
      %p447 = scmp.ne.s32.totalorder %s436, %s439
      %p448 = scmp.eq.s32.totalorder %s39, 3
      %p449 = por %p447, %p448
      %p450 = scmp.ne.s32.totalorder %s439, %s440
      %p451 = scmp.eq.s32.totalorder %s39, 0
      %p452 = por %p450, %p451
      %p453 = scmp.ne.s32.totalorder %s439, %s440
      %p454 = scmp.eq.s32.totalorder %s40, 3
      %p455 = por %p453, %p454
      %p457 = scmp.ne.s32.totalorder %s440, %s456
      %p458 = scmp.eq.s32.totalorder %s40, 0
      %p459 = por %p457, %p458
      %s461 = sadd.s32 %s460, 1
      %p464 = scmp.eq.s32.totalorder %s34, 3
      %p465 = scmp.ne.s32.totalorder %s460, %s462
      %p466 = scmp.eq.s32.totalorder %s34, 0
      %p467 = por %p465, %p466
      %p468 = scmp.ne.s32.totalorder %s460, %s462
      %p469 = scmp.eq.s32.totalorder %s39, 3
      %p470 = por %p468, %p469
      %p471 = scmp.ne.s32.totalorder %s462, %s463
      %p472 = scmp.eq.s32.totalorder %s39, 0
      %p473 = por %p471, %p472
      %p474 = scmp.ne.s32.totalorder %s462, %s463
      %p475 = scmp.eq.s32.totalorder %s40, 3
      %p476 = por %p474, %p475
      %p478 = scmp.ne.s32.totalorder %s463, %s477
      %p479 = scmp.eq.s32.totalorder %s40, 0
      %p480 = por %p478, %p479
      %s482 = sadd.s32 %s481, 1
      %p485 = scmp.eq.s32.totalorder %s34, 3
      %p486 = scmp.ne.s32.totalorder %s481, %s483
      %p487 = scmp.eq.s32.totalorder %s34, 0
      %p488 = por %p486, %p487
      %p489 = scmp.ne.s32.totalorder %s481, %s483
      %p490 = scmp.eq.s32.totalorder %s39, 3
      %p491 = por %p489, %p490
      %p492 = scmp.ne.s32.totalorder %s483, %s484
      %p493 = scmp.eq.s32.totalorder %s39, 0
      %p494 = por %p492, %p493
      %p495 = scmp.ne.s32.totalorder %s483, %s484
      %p496 = scmp.eq.s32.totalorder %s40, 3
      %p497 = por %p495, %p496
      %p499 = scmp.ne.s32.totalorder %s484, %s498
      %p500 = scmp.eq.s32.totalorder %s40, 0
      %p501 = por %p499, %p500
      %s502 = ssub.s32 %s41, %s53
      %p503 = scmp.eq.s32.totalorder %s502, 0
      %s505 = sadd.s32 %s504, 1
      %s506 = scalar_select %p503, %s504, %s505
      %p509 = pneg %p503
      %p510 = scmp.eq.s32.totalorder %s34, 3
      %p511 = por %p509, %p510
      %p512 = scmp.ne.s32.totalorder %s504, %s507
      %p513 = scmp.eq.s32.totalorder %s34, 0
      %p514 = por %p512, %p513
      %p515 = scmp.ne.s32.totalorder %s504, %s507
      %p516 = scmp.eq.s32.totalorder %s39, 3
      %p517 = por %p515, %p516
      %p518 = scmp.ne.s32.totalorder %s507, %s508
      %p519 = scmp.eq.s32.totalorder %s39, 0
      %p520 = por %p518, %p519
      %p521 = scmp.ne.s32.totalorder %s507, %s508
      %p522 = scmp.eq.s32.totalorder %s40, 3
      %p523 = por %p521, %p522
      %p525 = scmp.ne.s32.totalorder %s508, %s524
      %p526 = scmp.eq.s32.totalorder %s40, 0
      %p527 = por %p525, %p526
      %p528 = scmp.le.s32.totalorder 1, %s34
      %p529 = scmp.lt.s32.totalorder %s34, 5
      %p530 = pnand %p528, %p529
      %p531 = pneg %p530
      // Predicated region
      $region9: #{student_forward.1} parent=5 // pred_check
        _
      $region10: #{student_forward.1} parent=5 // pred_check_branch
        %533 = sbr.rel (%p530) target = $region12
      $region11: #{student_forward.1} parent=5 // pred_region
        %s534 = ssub.s32 %s34, 1
        // Predicated region
        $region13: #{student_forward.1} parent=11 // pred_check
          %p535 = pneg %p119
        $region14: #{student_forward.1} parent=11 // pred_check_branch
          %537 = sbr.rel (%p535) target = $region16
        $region15: #{student_forward.1} parent=11 // pred_region
          _
        $region16: #{student_forward.1} parent=11 // pred_fallthru
          _
        // Predicated region
        $region17: #{student_forward.1} parent=11 // pred_check
          %p538 = pneg %p140
        $region18: #{student_forward.1} parent=11 // pred_check_branch
          %540 = sbr.rel (%p538) target = $region20
        $region19: #{student_forward.1} parent=11 // pred_region
          _
        $region20: #{student_forward.1} parent=11 // pred_fallthru
          _
        // Predicated region
        $region21: #{student_forward.1} parent=11 // pred_check
          %p541 = pneg %p473
        $region22: #{student_forward.1} parent=11 // pred_check_branch
          %543 = sbr.rel (%p541) target = $region24
        $region23: #{student_forward.1} parent=11 // pred_region
          _
        $region24: #{student_forward.1} parent=11 // pred_fallthru
          _
        // Predicated region
        $region25: #{student_forward.1} parent=11 // pred_check
          %p544 = pneg %p494
        $region26: #{student_forward.1} parent=11 // pred_check_branch
          %546 = sbr.rel (%p544) target = $region28
        $region27: #{student_forward.1} parent=11 // pred_region
          %s548 = ssub.s32 16, 16
          %549 = vsyncadd [#allocation10], %s548
          %s551 = sshll.u32 [#allocation9], 4
          %s552 = int_to_ptr.vmem [resolvable:$true] %s551
          %554 = dma.hbm_to_vmem [thread:$0]  %s17, 16, %s552, [#allocation10]
        $region28: #{student_forward.1} parent=11 // pred_fallthru
          _
      $region12: #{student_forward.1} parent=5 // pred_fallthru
        _
      %p555 = scmp.lt.s32.totalorder %s34, 4
      // Predicated region
      $region29: #{student_forward.1} parent=5 // pred_check
        %p556 = pneg %p555
      $region30: #{student_forward.1} parent=5 // pred_check_branch
        %558 = sbr.rel (%p556) target = $region32
      $region31: #{student_forward.1} parent=5 // pred_region
        // Predicated region
        $region33: #{student_forward.1} parent=31 // pred_check
          %p559 = pneg %p66
        $region34: #{student_forward.1} parent=31 // pred_check_branch
          %561 = sbr.rel (%p559) target = $region36
        $region35: #{student_forward.1} parent=31 // pred_region
          %p562 = scmp.lt.s32.totalorder %s41, 1
          %s563 = scalar_select %p562, %s41, 1
          %s564 = smul.addr %s563, 2
          %s565 = smul.addr %s564, 4
          %s566 = scalar_lea.vmem %s0, %s565
        $region36: #{student_forward.1} parent=31 // pred_fallthru
          _
        // Predicated region
        $region37: #{student_forward.1} parent=31 // pred_check
          %p567 = pneg %p92
        $region38: #{student_forward.1} parent=31 // pred_check_branch
          %569 = sbr.rel (%p567) target = $region40
        $region39: #{student_forward.1} parent=31 // pred_region
          %p570 = scmp.lt.s32.totalorder %s41, 1
          %s571 = scalar_select %p570, %s41, 1
          %s572 = scalar_lea.vmem %s1, %s571
        $region40: #{student_forward.1} parent=31 // pred_fallthru
          _
        // Predicated region
        $region41: #{student_forward.1} parent=31 // pred_check
          %p573 = pneg %p160
        $region42: #{student_forward.1} parent=31 // pred_check_branch
          %575 = sbr.rel (%p573) target = $region44
        $region43: #{student_forward.1} parent=31 // pred_region
          %s576 = sand.u32 %s150, 1
          %s577 = scalar_lea.sflag [#allocation4], %s576
          %s578 = sand.u32 %s150, 1
          %s579 = smul.addr %s578, 192
          %s580 = scalar_lea.vmem [#allocation3], %s579
          %s582 = ssub.s32 3072, 3072
          %583 = vsyncadd %s577, %s582
          %s584 = smul.addr %s42, 48
          %s585 = smul.addr %s584, 64
          %s586 = scalar_lea.hbm %s4, %s585
          %s587 = sshll.u32 %s580, 4
          %s588 = int_to_ptr.vmem [resolvable:$true] %s587
          %593 = dma.hbm_to_vmem [thread:$0]  %s586, 3072, %s588, %s577, 192, 192, 12
        $region44: #{student_forward.1} parent=31 // pred_fallthru
          _
        // Predicated region
        $region45: #{student_forward.1} parent=31 // pred_check
          %p594 = pneg %p186
        $region46: #{student_forward.1} parent=31 // pred_check_branch
          %596 = sbr.rel (%p594) target = $region48
        $region47: #{student_forward.1} parent=31 // pred_region
          %p597 = scmp.lt.s32.totalorder %s42, 1
          %s598 = scalar_select %p597, %s42, 1
          %s599 = smul.addr %s598, 3
          %s600 = scalar_lea.vmem %s5, %s599
        $region48: #{student_forward.1} parent=31 // pred_fallthru
          _
        // Predicated region
        $region49: #{student_forward.1} parent=31 // pred_check
          %p601 = pneg %p212
        $region50: #{student_forward.1} parent=31 // pred_check_branch
          %603 = sbr.rel (%p601) target = $region52
        $region51: #{student_forward.1} parent=31 // pred_region
          %p604 = scmp.lt.s32.totalorder %s42, 1
          %s605 = scalar_select %p604, %s42, 1
          %s606 = smul.addr %s605, 16
          %s607 = smul.addr %s606, 4
          %s608 = scalar_lea.vmem %s6, %s607
        $region52: #{student_forward.1} parent=31 // pred_fallthru
          _
        // Predicated region
        $region53: #{student_forward.1} parent=31 // pred_check
          %p609 = pneg %p238
        $region54: #{student_forward.1} parent=31 // pred_check_branch
          %611 = sbr.rel (%p609) target = $region56
        $region55: #{student_forward.1} parent=31 // pred_region
          %p612 = scmp.lt.s32.totalorder %s42, 1
          %s613 = scalar_select %p612, %s42, 1
          %s614 = scalar_lea.vmem %s7, %s613
        $region56: #{student_forward.1} parent=31 // pred_fallthru
          _
        // Predicated region
        $region57: #{student_forward.1} parent=31 // pred_check
          %p615 = pneg %p264
        $region58: #{student_forward.1} parent=31 // pred_check_branch
          %617 = sbr.rel (%p615) target = $region60
        $region59: #{student_forward.1} parent=31 // pred_region
          %p618 = scmp.lt.s32.totalorder %s42, 1
          %s619 = scalar_select %p618, %s42, 1
          %s620 = scalar_lea.vmem %s8, %s619
        $region60: #{student_forward.1} parent=31 // pred_fallthru
          _
        // Predicated region
        $region61: #{student_forward.1} parent=31 // pred_check
          %p621 = pneg %p290
        $region62: #{student_forward.1} parent=31 // pred_check_branch
          %623 = sbr.rel (%p621) target = $region64
        $region63: #{student_forward.1} parent=31 // pred_region
          %p624 = scmp.lt.s32.totalorder %s42, 1
          %s625 = scalar_select %p624, %s42, 1
          %s626 = scalar_lea.vmem %s9, %s625
        $region64: #{student_forward.1} parent=31 // pred_fallthru
          _
        // Predicated region
        $region65: #{student_forward.1} parent=31 // pred_check
          %p627 = pneg %p316
        $region66: #{student_forward.1} parent=31 // pred_check_branch
          %629 = sbr.rel (%p627) target = $region68
        $region67: #{student_forward.1} parent=31 // pred_region
          %s630 = sand.u32 %s34, 1
          %s631 = scalar_lea.sflag [#allocation7], %s630
          %s632 = sand.u32 %s306, 1
          %s633 = smul.addr %s632, 128
          %s634 = scalar_lea.vmem [#allocation6], %s633
          %s636 = ssub.s32 2048, 2048
          %637 = vsyncadd %s631, %s636
          %s638 = smul.addr %s42, 32
          %s639 = smul.addr %s638, 64
          %s640 = scalar_lea.hbm %s10, %s639
          %s641 = sshll.u32 %s634, 4
          %s642 = int_to_ptr.vmem [resolvable:$true] %s641
          %647 = dma.hbm_to_vmem [thread:$0]  %s640, 2048, %s642, %s631, 128, 128, 8
        $region68: #{student_forward.1} parent=31 // pred_fallthru
          _
        // Predicated region
        $region69: #{student_forward.1} parent=31 // pred_check
          %p648 = pneg %p342
        $region70: #{student_forward.1} parent=31 // pred_check_branch
          %650 = sbr.rel (%p648) target = $region72
        $region71: #{student_forward.1} parent=31 // pred_region
          %p651 = scmp.lt.s32.totalorder %s42, 1
          %s652 = scalar_select %p651, %s42, 1
          %s653 = smul.addr %s652, 2
          %s654 = scalar_lea.vmem %s11, %s653
        $region72: #{student_forward.1} parent=31 // pred_fallthru
          _
        // Predicated region
        $region73: #{student_forward.1} parent=31 // pred_check
          %p655 = pneg %p368
        $region74: #{student_forward.1} parent=31 // pred_check_branch
          %657 = sbr.rel (%p655) target = $region76
        $region75: #{student_forward.1} parent=31 // pred_region
          %s658 = sand.u32 %s34, 1
          %s659 = scalar_lea.sflag [#allocation7], %s658
          %s660 = sand.u32 %s358, 1
          %s661 = smul.addr %s660, 128
          %s662 = scalar_lea.vmem [#allocation8], %s661
          %s664 = ssub.s32 2048, 2048
          %665 = vsyncadd %s659, %s664
          %s666 = smul.addr %s42, 32
          %s667 = smul.addr %s666, 64
          %s668 = scalar_lea.hbm %s12, %s667
          %s669 = sshll.u32 %s662, 4
          %s670 = int_to_ptr.vmem [resolvable:$true] %s669
          %675 = dma.hbm_to_vmem [thread:$0]  %s668, 2048, %s670, %s659, 64, 64, 4
        $region76: #{student_forward.1} parent=31 // pred_fallthru
          _
        // Predicated region
        $region77: #{student_forward.1} parent=31 // pred_check
          %p676 = pneg %p394
        $region78: #{student_forward.1} parent=31 // pred_check_branch
          %678 = sbr.rel (%p676) target = $region80
        $region79: #{student_forward.1} parent=31 // pred_region
          %p679 = scmp.lt.s32.totalorder %s42, 1
          %s680 = scalar_select %p679, %s42, 1
          %s681 = scalar_lea.vmem %s13, %s680
        $region80: #{student_forward.1} parent=31 // pred_fallthru
          _
        // Predicated region
        $region81: #{student_forward.1} parent=31 // pred_check
          %p682 = pneg %p420
        $region82: #{student_forward.1} parent=31 // pred_check_branch
          %684 = sbr.rel (%p682) target = $region84
        $region83: #{student_forward.1} parent=31 // pred_region
          %p685 = scmp.lt.s32.totalorder %s42, 1
          %s686 = scalar_select %p685, %s42, 1
          %s687 = scalar_lea.vmem %s14, %s686
        $region84: #{student_forward.1} parent=31 // pred_fallthru
          _
        // Predicated region
        $region85: #{student_forward.1} parent=31 // pred_check
          %p688 = pneg %p446
        $region86: #{student_forward.1} parent=31 // pred_check_branch
          %690 = sbr.rel (%p688) target = $region88
        $region87: #{student_forward.1} parent=31 // pred_region
          %p691 = scmp.lt.s32.totalorder %s42, 1
          %s692 = scalar_select %p691, %s42, 1
          %s693 = scalar_lea.vmem %s15, %s692
        $region88: #{student_forward.1} parent=31 // pred_fallthru
          _
      $region32: #{student_forward.1} parent=5 // pred_fallthru
        _
      %p694 = scmp.le.s32.totalorder 1, %s34
      %p695 = scmp.lt.s32.totalorder %s34, 5
      %p696 = pnand %p694, %p695
      %p697 = pneg %p696
      // Predicated region
      $region89: #{student_forward.1} parent=5 // pred_check
        _
      $region90: #{student_forward.1} parent=5 // pred_check_branch
        %699 = sbr.rel (%p696) target = $region92
      $region91: #{student_forward.1} parent=5 // pred_region
        %s700 = ssub.s32 %s34, 1
        %s701 = sand.u32 %s153, 1
        %s702 = scalar_lea.sflag [#allocation4], %s701
        %s703 = sand.u32 %s153, 1
        %s704 = smul.addr %s703, 192
        %s705 = scalar_lea.vmem [#allocation3], %s704
        // Predicated region
        $region93: #{student_forward.1} parent=91 // pred_check
          %p706 = pneg %p166
        $region94: #{student_forward.1} parent=91 // pred_check_branch
          %708 = sbr.rel (%p706) target = $region96
        $region95: #{student_forward.1} parent=91 // pred_region
          %709 = dma.done %s702, 3072
        $region96: #{student_forward.1} parent=91 // pred_fallthru
          _
        %s710 = sand.u32 %s39, 1
        %s711 = scalar_lea.sflag [#allocation7], %s710
        %s712 = sand.u32 %s309, 1
        %s713 = smul.addr %s712, 128
        %s714 = scalar_lea.vmem [#allocation6], %s713
        // Predicated region
        $region97: #{student_forward.1} parent=91 // pred_check
          %p715 = pneg %p322
        $region98: #{student_forward.1} parent=91 // pred_check_branch
          %717 = sbr.rel (%p715) target = $region100
        $region99: #{student_forward.1} parent=91 // pred_region
          %718 = dma.done %s711, 2048
        $region100: #{student_forward.1} parent=91 // pred_fallthru
          _
        %s719 = sand.u32 %s39, 1
        %s720 = scalar_lea.sflag [#allocation7], %s719
        %s721 = sand.u32 %s361, 1
        %s722 = smul.addr %s721, 128
        %s723 = scalar_lea.vmem [#allocation8], %s722
        // Predicated region
        $region101: #{student_forward.1} parent=91 // pred_check
          %p724 = pneg %p374
        $region102: #{student_forward.1} parent=91 // pred_check_branch
          %726 = sbr.rel (%p724) target = $region104
        $region103: #{student_forward.1} parent=91 // pred_region
          %727 = dma.done %s720, 2048
        $region104: #{student_forward.1} parent=91 // pred_fallthru
          _
        // Predicated region
        $region105: #{student_forward.1} parent=91 // pred_check
          %p728 = pneg %p494
        $region106: #{student_forward.1} parent=91 // pred_check_branch
          %730 = sbr.rel (%p728) target = $region108
        $region107: #{student_forward.1} parent=91 // pred_region
          %731 = dma.done [#allocation10], 16
        $region108: #{student_forward.1} parent=91 // pred_fallthru
          _
        %p732 = scmp.lt.s32.totalorder %s43, 1
        %s733 = scalar_select %p732, %s43, 1
        %s734 = smul.addr %s733, 2
        %s735 = smul.addr %s734, 4
        %s736 = scalar_lea.vmem %s0, %s735
        %p737 = pneg %p72
        %p738 = pneg %p69
        %p739 = scmp.lt.s32.totalorder %s43, 1
        %s740 = scalar_select %p739, %s43, 1
        %s741 = scalar_lea.vmem %s1, %s740
        %p742 = pneg %p98
        %p743 = pneg %p95
        %p744 = pneg %p119
        %p745 = pneg %p116
        %p746 = pneg %p140
        %p747 = pneg %p137
        %s748 = sand.u32 %s153, 1
        %s749 = scalar_lea.sflag [#allocation4], %s748
        %s750 = sand.u32 %s153, 1
        %s751 = smul.addr %s750, 192
        %s752 = scalar_lea.vmem [#allocation3], %s751
        %p753 = pneg %p166
        %p754 = pneg %p163
        %p755 = scmp.lt.s32.totalorder %s44, 1
        %s756 = scalar_select %p755, %s44, 1
        %s757 = smul.addr %s756, 3
        %s758 = scalar_lea.vmem %s5, %s757
        %p759 = pneg %p192
        %p760 = pneg %p189
        %p761 = scmp.lt.s32.totalorder %s44, 1
        %s762 = scalar_select %p761, %s44, 1
        %s763 = smul.addr %s762, 16
        %s764 = smul.addr %s763, 4
        %s765 = scalar_lea.vmem %s6, %s764
        %p766 = pneg %p218
        %p767 = pneg %p215
        %p768 = scmp.lt.s32.totalorder %s44, 1
        %s769 = scalar_select %p768, %s44, 1
        %s770 = scalar_lea.vmem %s7, %s769
        %p771 = pneg %p244
        %p772 = pneg %p241
        %p773 = scmp.lt.s32.totalorder %s44, 1
        %s774 = scalar_select %p773, %s44, 1
        %s775 = scalar_lea.vmem %s8, %s774
        %p776 = pneg %p270
        %p777 = pneg %p267
        %p778 = scmp.lt.s32.totalorder %s44, 1
        %s779 = scalar_select %p778, %s44, 1
        %s780 = scalar_lea.vmem %s9, %s779
        %p781 = pneg %p296
        %p782 = pneg %p293
        %s783 = sand.u32 %s39, 1
        %s784 = scalar_lea.sflag [#allocation7], %s783
        %s785 = sand.u32 %s309, 1
        %s786 = smul.addr %s785, 128
        %s787 = scalar_lea.vmem [#allocation6], %s786
        %p788 = pneg %p322
        %p789 = pneg %p319
        %p790 = scmp.lt.s32.totalorder %s44, 1
        %s791 = scalar_select %p790, %s44, 1
        %s792 = smul.addr %s791, 2
        %s793 = scalar_lea.vmem %s11, %s792
        %p794 = pneg %p348
        %p795 = pneg %p345
        %s796 = sand.u32 %s39, 1
        %s797 = scalar_lea.sflag [#allocation7], %s796
        %s798 = sand.u32 %s361, 1
        %s799 = smul.addr %s798, 128
        %s800 = scalar_lea.vmem [#allocation8], %s799
        %p801 = pneg %p374
        %p802 = pneg %p371
        %p803 = scmp.lt.s32.totalorder %s44, 1
        %s804 = scalar_select %p803, %s44, 1
        %s805 = scalar_lea.vmem %s13, %s804
        %p806 = pneg %p400
        %p807 = pneg %p397
        %p808 = scmp.lt.s32.totalorder %s44, 1
        %s809 = scalar_select %p808, %s44, 1
        %s810 = scalar_lea.vmem %s14, %s809
        %p811 = pneg %p426
        %p812 = pneg %p423
        %p813 = scmp.lt.s32.totalorder %s44, 1
        %s814 = scalar_select %p813, %s44, 1
        %s815 = scalar_lea.vmem %s15, %s814
        %p816 = pneg %p452
        %p817 = pneg %p449
        %p818 = pneg %p473
        %p819 = pneg %p470
        %p820 = pneg %p494
        %p821 = pneg %p491
        %p822 = pneg %p520
        %p823 = pneg %p517
        %s824 = sand.u32 %s507, 1
        %s825 = scalar_lea.sflag [#allocation5], %s824
        %s826 = sand.u32 %s507, 1
        %s827 = scalar_lea.vmem [#allocation11], %s826
        %p828 = scmp.lt.s32.totalorder %s43, 1
        %s829 = scalar_select %p828, %s43, 1
        %s830 = smul.addr %s829, 2
        %s831 = smul.addr %s830, 4
        %s832 = scalar_lea.vmem %s0, %s831
        %p833 = scmp.lt.s32.totalorder %s43, 1
        %s834 = scalar_select %p833, %s43, 1
        %s835 = scalar_lea.vmem %s1, %s834
        %p836 = scmp.lt.s32.totalorder %s44, 1
        %s837 = scalar_select %p836, %s44, 1
        %s838 = smul.addr %s837, 3
        %s839 = scalar_lea.vmem %s5, %s838
        %p840 = scmp.lt.s32.totalorder %s44, 1
        %s841 = scalar_select %p840, %s44, 1
        %s842 = smul.addr %s841, 16
        %s843 = smul.addr %s842, 4
        %s844 = scalar_lea.vmem %s6, %s843
        %p845 = scmp.lt.s32.totalorder %s44, 1
        %s846 = scalar_select %p845, %s44, 1
        %s847 = scalar_lea.vmem %s7, %s846
        %p848 = scmp.lt.s32.totalorder %s44, 1
        %s849 = scalar_select %p848, %s44, 1
        %s850 = scalar_lea.vmem %s8, %s849
        %p851 = scmp.lt.s32.totalorder %s44, 1
        %s852 = scalar_select %p851, %s44, 1
        %s853 = scalar_lea.vmem %s9, %s852
        %p854 = scmp.lt.s32.totalorder %s44, 1
        %s855 = scalar_select %p854, %s44, 1
        %s856 = smul.addr %s855, 2
        %s857 = scalar_lea.vmem %s11, %s856
        %p858 = scmp.lt.s32.totalorder %s44, 1
        %s859 = scalar_select %p858, %s44, 1
        %s860 = scalar_lea.vmem %s13, %s859
        %p861 = scmp.lt.s32.totalorder %s44, 1
        %s862 = scalar_select %p861, %s44, 1
        %s863 = scalar_lea.vmem %s14, %s862
        %p864 = scmp.lt.s32.totalorder %s44, 1
        %s865 = scalar_select %p864, %s44, 1
        %s866 = scalar_lea.vmem %s15, %s865
        %p868 = scmp.eq.s32.totalorder %s44, 0
        // Predicated region
        $region109: #{student_forward.1} parent=91 // pred_check
          %p869 = pneg %p868
        $region110: #{student_forward.1} parent=91 // pred_check_branch
          %871 = sbr.rel (%p869) target = $region112
        $region111: #{student_forward.1} parent=91 // pred_region
          %v872 = vld [vmem:[%s832] sm:$0xf]
          %v873 = vld [vmem:[%s832 + $0x4] sm:$0xf]
          %v874 = vunpack.c.l.bf16 %v872
          %v875 = vunpack.c.l.bf16 %v873
          %v876 = vld [vmem:[%s2] sm:$0x1]
          %v877 = vld [vmem:[%s3] sm:$0x1]
          %878 = vadd.xlane.f32.xlu0 %v874
          %v879 = vpop.xlane.xlu0 %878
          %880 = vadd.xlane.f32.xlu0 %v875
          %v881 = vpop.xlane.xlu0 %880
          %v882 = vrcp.pop 128.0
          %v883 = vmul.f32 %v879, %v882
          %v884 = vmul.f32 %v881, %v882
          %v885 = vsub.f32 %v874, %v883
          %v886 = vsub.f32 %v875, %v884
          %v887 = vmul.f32 %v885, %v885
          %v888 = vmul.f32 %v886, %v886
          %889 = vadd.xlane.f32.xlu0 %v887
          %v890 = vpop.xlane.xlu0 %889
          %891 = vadd.xlane.f32.xlu0 %v888
          %v892 = vpop.xlane.xlu0 %891
          %v893 = vmul.f32 %v890, %v882
          %v894 = vmul.f32 %v892, %v882
          %v895 = vadd.f32 %v893, 1e-12
          %v896 = vadd.f32 %v894, 1e-12
          %v897 = vrsqrt.pop %v895
          %v898 = vrsqrt.pop %v896
          %v899 = vmul.f32 %v885, %v897
          %v900 = vmul.f32 %v886, %v898
          %v902 = vlaneseq
          %v903 = vshrl.u32 %v902, 7
          %v904 = vsub.s32 0, %v903
          %v905 = vrot.slane %v876, %v904
          %v907 = vmul.f32 %v899, %v905
          %v908 = vmul.f32 %v900, %v905
          %v910 = vlaneseq
          %v911 = vshrl.u32 %v910, 7
          %v912 = vsub.s32 0, %v911
          %v913 = vrot.slane %v877, %v912
          %v915 = vadd.f32 %v907, %v913
          %v916 = vadd.f32 %v908, %v913
          %v917 = vpack.c.bf16 %v916, %v915
          %v919 = vunpack.c.l.b16 %v917
          %v920 = vunpack.c.h.b16 %v917
          %v921 = vpack.c.b16 %v919, %v919
          %v922 = vpack.c.b16 %v920, %v920
          %925 = vst [vmem:[#allocation2] sm:$0xf] %v921
          %926 = vst [vmem:[#allocation2 + $0x4] sm:$0xf] %v922
        $region112: #{student_forward.1} parent=91 // pred_fallthru
          _
        %v927 = vld [vmem:[#allocation2] sm:$0xf]
        %v928 = vld [vmem:[#allocation2 + $0x4] sm:$0xf]
        %v929 = vld [vmem:[%s705] sm:$0xff]
        %v930 = vld [vmem:[%s705 + $0x8] sm:$0xf]
        %v931 = vld [vmem:[%s705 + $0xc] sm:$0xff]
        %v932 = vld [vmem:[%s705 + $0x14] sm:$0xf]
        %v933 = vld [vmem:[%s705 + $0x18] sm:$0xff]
        %v934 = vld [vmem:[%s705 + $0x20] sm:$0xf]
        %v935 = vld [vmem:[%s705 + $0x24] sm:$0xff]
        %v936 = vld [vmem:[%s705 + $0x2c] sm:$0xf]
        %v937 = vld [vmem:[%s705 + $0x30] sm:$0xff]
        %v938 = vld [vmem:[%s705 + $0x38] sm:$0xf]
        %v939 = vld [vmem:[%s705 + $0x3c] sm:$0xff]
        %v940 = vld [vmem:[%s705 + $0x44] sm:$0xf]
        %v941 = vld [vmem:[%s705 + $0x48] sm:$0xff]
        %v942 = vld [vmem:[%s705 + $0x50] sm:$0xf]
        %v943 = vld [vmem:[%s705 + $0x54] sm:$0xff]
        %v944 = vld [vmem:[%s705 + $0x5c] sm:$0xf]
        %v945 = vld [vmem:[%s705 + $0x60] sm:$0xff]
        %v946 = vld [vmem:[%s705 + $0x68] sm:$0xf]
        %v947 = vld [vmem:[%s705 + $0x6c] sm:$0xff]
        %v948 = vld [vmem:[%s705 + $0x74] sm:$0xf]
        %v949 = vld [vmem:[%s705 + $0x78] sm:$0xff]
        %v950 = vld [vmem:[%s705 + $0x80] sm:$0xf]
        %v951 = vld [vmem:[%s705 + $0x84] sm:$0xff]
        %v952 = vld [vmem:[%s705 + $0x8c] sm:$0xf]
        %v953 = vld [vmem:[%s705 + $0x90] sm:$0xff]
        %v954 = vld [vmem:[%s705 + $0x98] sm:$0xf]
        %v955 = vld [vmem:[%s705 + $0x9c] sm:$0xff]
        %v956 = vld [vmem:[%s705 + $0xa4] sm:$0xf]
        %v957 = vld [vmem:[%s705 + $0xa8] sm:$0xff]
        %v958 = vld [vmem:[%s705 + $0xb0] sm:$0xf]
        %v959 = vld [vmem:[%s705 + $0xb4] sm:$0xff]
        %v960 = vld [vmem:[%s705 + $0xbc] sm:$0xf]
        %v961 = vld [vmem:[%s839] sm:$0x7]
        %v963 = vlaneseq
        %v964 = vshrl.u32 %v963, 7
        %v965 = vsub.s32 0, %v964
        %v966 = vrot.slane %v961, %v965
        %v967 = vlaneseq
        %v968 = vshrl.u32 %v967, 7
        %v969 = vsub.s32 1, %v968
        %v970 = vrot.slane %v961, %v969
        %v971 = vlaneseq
        %v972 = vshrl.u32 %v971, 7
        %v973 = vsub.s32 2, %v972
        %v974 = vrot.slane %v961, %v973
        %v980 = vunpack.c.l.b16 %v927
        %v981 = vunpack.c.l.b16 %v928
        %v982 = vpack.c.b16 %v981, %v980
        %v1016 = vunpack.c.l.b16 %v929
        %v1017 = vunpack.c.h.b16 %v929
        %v1018 = vunpack.c.l.b16 %v930
        %v1019 = vunpack.c.l.b16 %v931
        %v1020 = vunpack.c.h.b16 %v931
        %v1021 = vunpack.c.l.b16 %v932
        %v1022 = vunpack.c.l.b16 %v933
        %v1023 = vunpack.c.h.b16 %v933
        %v1024 = vunpack.c.l.b16 %v934
        %v1025 = vunpack.c.l.b16 %v935
        %v1026 = vunpack.c.h.b16 %v935
        %v1027 = vunpack.c.l.b16 %v936
        %v1028 = vunpack.c.l.b16 %v937
        %v1029 = vunpack.c.h.b16 %v937
        %v1030 = vunpack.c.l.b16 %v938
        %v1031 = vunpack.c.l.b16 %v939
        %v1032 = vunpack.c.h.b16 %v939
        %v1033 = vunpack.c.l.b16 %v940
        %v1034 = vunpack.c.l.b16 %v941
        %v1035 = vunpack.c.h.b16 %v941
        %v1036 = vunpack.c.l.b16 %v942
        %v1037 = vunpack.c.l.b16 %v943
        %v1038 = vunpack.c.h.b16 %v943
        %v1039 = vunpack.c.l.b16 %v944
        %v1040 = vunpack.c.l.b16 %v945
        %v1041 = vunpack.c.h.b16 %v945
        %v1042 = vunpack.c.l.b16 %v946
        %v1043 = vunpack.c.l.b16 %v947
        %v1044 = vunpack.c.h.b16 %v947
        %v1045 = vunpack.c.l.b16 %v948
        %v1046 = vunpack.c.l.b16 %v949
        %v1047 = vunpack.c.h.b16 %v949
        %v1048 = vunpack.c.l.b16 %v950
        %v1049 = vunpack.c.l.b16 %v951
        %v1050 = vunpack.c.h.b16 %v951
        %v1051 = vunpack.c.l.b16 %v952
        %v1052 = vunpack.c.l.b16 %v953
        %v1053 = vunpack.c.h.b16 %v953
        %v1054 = vunpack.c.l.b16 %v954
        %v1055 = vunpack.c.l.b16 %v955
        %v1056 = vunpack.c.h.b16 %v955
        %v1057 = vunpack.c.l.b16 %v956
        %v1058 = vunpack.c.l.b16 %v957
        %v1059 = vunpack.c.h.b16 %v957
        %v1060 = vunpack.c.l.b16 %v958
        %v1061 = vunpack.c.l.b16 %v959
        %v1062 = vunpack.c.h.b16 %v959
        %v1063 = vunpack.c.l.b16 %v960
        %v1064 = vpack.c.b16 %v1019, %v1016
        %v1065 = vpack.c.b16 %v1020, %v1017
        %v1066 = vpack.c.b16 %v1021, %v1018
        %v1067 = vpack.c.b16 %v1025, %v1022
        %v1068 = vpack.c.b16 %v1026, %v1023
        %v1069 = vpack.c.b16 %v1027, %v1024
        %v1070 = vpack.c.b16 %v1031, %v1028
        %v1071 = vpack.c.b16 %v1032, %v1029
        %v1072 = vpack.c.b16 %v1033, %v1030
        %v1073 = vpack.c.b16 %v1037, %v1034
        %v1074 = vpack.c.b16 %v1038, %v1035
        %v1075 = vpack.c.b16 %v1039, %v1036
        %v1076 = vpack.c.b16 %v1043, %v1040
        %v1077 = vpack.c.b16 %v1044, %v1041
        %v1078 = vpack.c.b16 %v1045, %v1042
        %v1079 = vpack.c.b16 %v1049, %v1046
        %v1080 = vpack.c.b16 %v1050, %v1047
        %v1081 = vpack.c.b16 %v1051, %v1048
        %v1082 = vpack.c.b16 %v1055, %v1052
        %v1083 = vpack.c.b16 %v1056, %v1053
        %v1084 = vpack.c.b16 %v1057, %v1054
        %v1085 = vpack.c.b16 %v1061, %v1058
        %v1086 = vpack.c.b16 %v1062, %v1059
        %v1087 = vpack.c.b16 %v1063, %v1060
        %1112 = vmatprep.subr.bf16.mxu0 %v1086
        %1113 = vmatpush1.bf16.msra.mxu0 %v1085
        %1114 = vmatprep.subr.bf16.mxu0 %v1083
        %1115 = vmatpush1.bf16.msra.mxu0 %v1082
        %1116 = vmatprep.subr.bf16.mxu0 %v1080
        %1117 = vmatpush1.bf16.msra.mxu0 %v1079
        %1118 = vmatprep.subr.bf16.mxu0 %v1077
        %1119 = vmatpush1.bf16.msra.mxu0 %v1076
        %1120 = vmatprep.subr.bf16.mxu0 %v1074
        %1121 = vmatpush1.bf16.msra.mxu0 %v1073
        %1122 = vmatprep.subr.bf16.mxu0 %v1071
        %1123 = vmatpush1.bf16.msra.mxu0 %v1070
        %1124 = vmatprep.subr.bf16.mxu0 %v1068
        %1125 = vmatpush1.bf16.msra.mxu0 %v1067
        %1126 = vmatprep.subr.bf16.mxu0 %v1065
        %1127 = vmatpush1.bf16.msra.mxu0 %v1064
        %1128 = vmatprep.subr.bf16.mxu0 0
        %1129 = vmatpush2.bf16.msra.mxu0 0
        %1130 = vmatprep.subr.bf16.mxu0 0
        %1131 = vmatpush2.bf16.msra.mxu0 0
        %1132 = vmatprep.subr.bf16.mxu0 0
        %1133 = vmatpush2.bf16.msra.mxu0 0
        %1134 = vmatprep.subr.bf16.mxu0 0
        %1135 = vmatpush2.bf16.msra.mxu0 0
        %1136 = vmatprep.subr.bf16.mxu0 0
        %1137 = vmatpush2.bf16.msra.mxu0 0
        %1138 = vmatprep.subr.bf16.mxu0 0
        %1139 = vmatpush2.bf16.msra.mxu0 0
        %1140 = vmatprep.subr.bf16.mxu0 0
        %1141 = vmatpush2.bf16.msra.mxu0 0
        %1142 = vmatprep.subr.bf16.mxu0 0
        %1143 = vmatpush2.bf16.msra.mxu0 0
        %1144 = vmatprep.mubr.bf16.mxu0 0
        %1145 = vmatmul.mubr.bf16.gmra.mxu0 %v982
        %v1146 = vpop.f32.mrf.mxu0
        %v1147 = vadd.f32 %v966, %v1146
        %v1148 = vpop.f32.mrf.mxu0
        %v1149 = vadd.f32 %v970, %v1148
        %v1150 = vpop.f32.mrf.mxu0
        %v1151 = vadd.f32 %v966, %v1150
        %v1152 = vpop.f32.mrf.mxu0
        %v1153 = vadd.f32 %v970, %v1152
        %1154 = vdwg.mxu0
        %1155 = vmatprep.subr.bf16.mxu0 0
        %1156 = vmatpush1.bf16.msra.mxu0 %v1087
        %1157 = vmatprep.subr.bf16.mxu0 0
        %1158 = vmatpush1.bf16.msra.mxu0 %v1084
        %1159 = vmatprep.subr.bf16.mxu0 0
        %1160 = vmatpush1.bf16.msra.mxu0 %v1081
        %1161 = vmatprep.subr.bf16.mxu0 0
        %1162 = vmatpush1.bf16.msra.mxu0 %v1078
        %1163 = vmatprep.subr.bf16.mxu0 0
        %1164 = vmatpush1.bf16.msra.mxu0 %v1075
        %1165 = vmatprep.subr.bf16.mxu0 0
        %1166 = vmatpush1.bf16.msra.mxu0 %v1072
        %1167 = vmatprep.subr.bf16.mxu0 0
        %1168 = vmatpush1.bf16.msra.mxu0 %v1069
        %1169 = vmatprep.subr.bf16.mxu0 0
        %1170 = vmatpush1.bf16.msra.mxu0 %v1066
        %1171 = vmatprep.subr.bf16.mxu0 0
        %1172 = vmatpush2.bf16.msra.mxu0 0
        %1173 = vmatprep.subr.bf16.mxu0 0
        %1174 = vmatpush2.bf16.msra.mxu0 0
        %1175 = vmatprep.subr.bf16.mxu0 0
        %1176 = vmatpush2.bf16.msra.mxu0 0
        %1177 = vmatprep.subr.bf16.mxu0 0
        %1178 = vmatpush2.bf16.msra.mxu0 0
        %1179 = vmatprep.subr.bf16.mxu0 0
        %1180 = vmatpush2.bf16.msra.mxu0 0
        %1181 = vmatprep.subr.bf16.mxu0 0
        %1182 = vmatpush2.bf16.msra.mxu0 0
        %1183 = vmatprep.subr.bf16.mxu0 0
        %1184 = vmatpush2.bf16.msra.mxu0 0
        %1185 = vmatprep.subr.bf16.mxu0 0
        %1186 = vmatpush2.bf16.msra.mxu0 0
        %1187 = vmatprep.mubr.bf16.mxu0 0
        %1188 = vmatmul.mubr.bf16.gmra.mxu0 %v982
        %v1189 = vpop.f32.mrf.mxu0
        %v1190 = vadd.f32 %v974, %v1189
        %v1191 = vpop.f32.mrf.mxu0
        %v1192 = vpop.f32.mrf.mxu0
        %v1193 = vadd.f32 %v974, %v1192
        %v1194 = vpop.f32.mrf.mxu0
        %1195 = vdwg.mxu0
        %v1196 = vld [vmem:[%s835] sm:$0x1]
        %v1197 = vld [vmem:[%s844] sm:$0xf]
        %v1198 = vld [vmem:[%s844 + $0x4] sm:$0xf]
        %v1199 = vld [vmem:[%s844 + $0x8] sm:$0xf]
        %v1200 = vld [vmem:[%s844 + $0xc] sm:$0xf]
        %v1201 = vld [vmem:[%s844 + $0x10] sm:$0xf]
        %v1202 = vld [vmem:[%s844 + $0x14] sm:$0xf]
        %v1203 = vld [vmem:[%s844 + $0x18] sm:$0xf]
        %v1204 = vld [vmem:[%s844 + $0x1c] sm:$0xf]
        %v1205 = vld [vmem:[%s844 + $0x20] sm:$0xf]
        %v1206 = vld [vmem:[%s844 + $0x24] sm:$0xf]
        %v1207 = vld [vmem:[%s844 + $0x28] sm:$0xf]
        %v1208 = vld [vmem:[%s844 + $0x2c] sm:$0xf]
        %v1209 = vld [vmem:[%s844 + $0x30] sm:$0xf]
        %v1210 = vld [vmem:[%s844 + $0x34] sm:$0xf]
        %v1211 = vld [vmem:[%s844 + $0x38] sm:$0xf]
        %v1212 = vld [vmem:[%s844 + $0x3c] sm:$0xf]
        %v1213 = vpack.c.bf16 %v1151, %v1147
        %v1214 = vpack.c.bf16 %v1153, %v1149
        %v1215 = vpack.c.bf16 %v1193, %v1190
        %v1217 = vlaneseq
        %v1218 = vshrl.u32 %v1217, 7
        %v1219 = vsub.s32 0, %v1218
        %v1220 = vrot.slane %v1196, %v1219
        %vm1222 = vcmask 261120
        %v1224 = vsel %vm1222, %v1213, 0
        %v1227 = vsel %vm1222, %v1214, 0
        %1229 = vmatprep.subr.bf16.mxu0 0
        %1230 = vmatpush1.bf16.xpose.msra.mxu0 0
        %1231 = vmatprep.subr.bf16.mxu0 0
        %1232 = vmatpush1.bf16.xpose.msra.mxu0 0
        %1233 = vmatprep.subr.bf16.mxu0 0
        %1234 = vmatpush1.bf16.xpose.msra.mxu0 0
        %1235 = vmatprep.subr.bf16.mxu0 0
        %1236 = vmatpush1.bf16.xpose.msra.mxu0 0
        %1237 = vmatprep.subr.bf16.mxu0 0
        %1238 = vmatpush1.bf16.xpose.msra.mxu0 0
        %1239 = vmatprep.subr.bf16.mxu0 0
        %1240 = vmatpush1.bf16.xpose.msra.mxu0 0
        %1241 = vmatprep.subr.bf16.mxu0 0
        %1242 = vmatpush1.bf16.xpose.msra.mxu0 0
        %1243 = vmatprep.subr.bf16.mxu0 0
        %1244 = vmatpush1.bf16.xpose.msra.mxu0 %v1227
        %1245 = vmatprep.subr.bf16.mxu0 0
        %1246 = vmatpush2.bf16.xpose.msra.mxu0 0
        %1247 = vmatprep.subr.bf16.mxu0 0
        %1248 = vmatpush2.bf16.xpose.msra.mxu0 0
        %1249 = vmatprep.subr.bf16.mxu0 0
        %1250 = vmatpush2.bf16.xpose.msra.mxu0 0
        %1251 = vmatprep.subr.bf16.mxu0 0
        %1252 = vmatpush2.bf16.xpose.msra.mxu0 0
        %1253 = vmatprep.subr.bf16.mxu0 0
        %1254 = vmatpush2.bf16.xpose.msra.mxu0 0
        %1255 = vmatprep.subr.bf16.mxu0 0
        %1256 = vmatpush2.bf16.xpose.msra.mxu0 0
        %1257 = vmatprep.subr.bf16.mxu0 0
        %1258 = vmatpush2.bf16.xpose.msra.mxu0 0
        %1259 = vmatprep.subr.bf16.mxu0 0
        %1260 = vmatpush2.bf16.xpose.msra.mxu0 0
        %1261 = vmatprep.mubr.bf16.mxu0 0
        %1262 = vmatmul.mubr.bf16.gmra.mxu0 %v1224
        %v1263 = vpop.f32.mrf.mxu0
        %v1264 = vadd.f32 %v1220, %v1263
        %v1265 = vpop.f32.mrf.mxu0
        %v1266 = vpop.f32.mrf.mxu0
        %v1267 = vadd.f32 %v1220, %v1266
        %v1268 = vpop.f32.mrf.mxu0
        %1269 = vdwg.mxu0
        %vm1270 = vcmask 130048
        %v1271 = vsel %vm1270, %v1264, -inf
        %1272 = vmax.xlane.f32.xlu0 %v1271
        %v1273 = vpop.xlane.xlu0 %1272
        %v1274 = vsel %vm1270, %v1267, -inf
        %1275 = vmax.xlane.f32.xlu0 %v1274
        %v1276 = vpop.xlane.xlu0 %1275
        %v1277 = vsub.f32 %v1264, %v1273
        %v1278 = vsub.f32 %v1267, %v1276
        %v1279 = vmul.f32 %v1277, 1.442695
        %v1280 = vpow.pop %v1279
        %v1281 = vmul.f32 %v1278, 1.442695
        %v1282 = vpow.pop %v1281
        %v1283 = vsel %vm1270, %v1280, 0.0
        %1284 = vadd.xlane.f32.xlu0 %v1283
        %v1285 = vpop.xlane.xlu0 %1284
        %v1286 = vsel %vm1270, %v1282, 0.0
        %1287 = vadd.xlane.f32.xlu0 %v1286
        %v1288 = vpop.xlane.xlu0 %1287
        %v1289 = vrcp.pop %v1285
        %v1290 = vrcp.pop %v1288
        %v1291 = vmul.f32 %v1280, %v1289
        %v1292 = vmul.f32 %v1282, %v1290
        %v1293 = vpack.c.bf16 %v1292, %v1291
        %v1295 = vsel %vm1270, %v1293, 0
        %1297 = vmatprep.subr.bf16.mxu0 0
        %1298 = vmatpush1.bf16.msra.mxu0 0
        %1299 = vmatprep.subr.bf16.mxu0 0
        %1300 = vmatpush1.bf16.msra.mxu0 0
        %1301 = vmatprep.subr.bf16.mxu0 0
        %1302 = vmatpush1.bf16.msra.mxu0 0
        %1303 = vmatprep.subr.bf16.mxu0 0
        %1304 = vmatpush1.bf16.msra.mxu0 0
        %1305 = vmatprep.subr.bf16.mxu0 0
        %1306 = vmatpush1.bf16.msra.mxu0 0
        %1307 = vmatprep.subr.bf16.mxu0 0
        %1308 = vmatpush1.bf16.msra.mxu0 0
        %1309 = vmatprep.subr.bf16.mxu0 0
        %1310 = vmatpush1.bf16.msra.mxu0 0
        %1311 = vmatprep.subr.bf16.mxu0 0
        %1312 = vmatpush1.bf16.msra.mxu0 %v1215
        %1313 = vmatprep.subr.bf16.mxu0 0
        %1314 = vmatpush2.bf16.msra.mxu0 0
        %1315 = vmatprep.subr.bf16.mxu0 0
        %1316 = vmatpush2.bf16.msra.mxu0 0
        %1317 = vmatprep.subr.bf16.mxu0 0
        %1318 = vmatpush2.bf16.msra.mxu0 0
        %1319 = vmatprep.subr.bf16.mxu0 0
        %1320 = vmatpush2.bf16.msra.mxu0 0
        %1321 = vmatprep.subr.bf16.mxu0 0
        %1322 = vmatpush2.bf16.msra.mxu0 0
        %1323 = vmatprep.subr.bf16.mxu0 0
        %1324 = vmatpush2.bf16.msra.mxu0 0
        %1325 = vmatprep.subr.bf16.mxu0 0
        %1326 = vmatpush2.bf16.msra.mxu0 0
        %1327 = vmatprep.subr.bf16.mxu0 0
        %1328 = vmatpush2.bf16.msra.mxu0 0
        %1329 = vmatprep.mubr.bf16.mxu0 0
        %1330 = vmatmul.mubr.bf16.gmra.mxu0 %v1295
        %v1331 = vpop.f32.mrf.mxu0
        %v1332 = vadd.f32 0.0, %v1331
        %v1333 = vpop.f32.mrf.mxu0
        %v1334 = vpop.f32.mrf.mxu0
        %v1335 = vadd.f32 0.0, %v1334
        %v1336 = vpop.f32.mrf.mxu0
        %1337 = vdwg.mxu0
        %v1338 = vpack.c.bf16 %v1335, %v1332
        %1340 = vrot.lane.b32.xlu0 %v1213, 96
        %v1341 = vpop.permute.xlu0 %1340
        %1343 = vrot.lane.b32.xlu0 %v1214, 96
        %v1344 = vpop.permute.xlu0 %1343
        %v1346 = vsel %vm1222, %v1341, 0
        %v1349 = vsel %vm1222, %v1344, 0
        %1351 = vmatprep.subr.bf16.mxu0 0
        %1352 = vmatpush1.bf16.xpose.msra.mxu0 0
        %1353 = vmatprep.subr.bf16.mxu0 0
        %1354 = vmatpush1.bf16.xpose.msra.mxu0 0
        %1355 = vmatprep.subr.bf16.mxu0 0
        %1356 = vmatpush1.bf16.xpose.msra.mxu0 0
        %1357 = vmatprep.subr.bf16.mxu0 0
        %1358 = vmatpush1.bf16.xpose.msra.mxu0 0
        %1359 = vmatprep.subr.bf16.mxu0 0
        %1360 = vmatpush1.bf16.xpose.msra.mxu0 0
        %1361 = vmatprep.subr.bf16.mxu0 0
        %1362 = vmatpush1.bf16.xpose.msra.mxu0 0
        %1363 = vmatprep.subr.bf16.mxu0 0
        %1364 = vmatpush1.bf16.xpose.msra.mxu0 0
        %1365 = vmatprep.subr.bf16.mxu0 0
        %1366 = vmatpush1.bf16.xpose.msra.mxu0 %v1349
        %1367 = vmatprep.subr.bf16.mxu0 0
        %1368 = vmatpush2.bf16.xpose.msra.mxu0 0
        %1369 = vmatprep.subr.bf16.mxu0 0
        %1370 = vmatpush2.bf16.xpose.msra.mxu0 0
        %1371 = vmatprep.subr.bf16.mxu0 0
        %1372 = vmatpush2.bf16.xpose.msra.mxu0 0
        %1373 = vmatprep.subr.bf16.mxu0 0
        %1374 = vmatpush2.bf16.xpose.msra.mxu0 0
        %1375 = vmatprep.subr.bf16.mxu0 0
        %1376 = vmatpush2.bf16.xpose.msra.mxu0 0
        %1377 = vmatprep.subr.bf16.mxu0 0
        %1378 = vmatpush2.bf16.xpose.msra.mxu0 0
        %1379 = vmatprep.subr.bf16.mxu0 0
        %1380 = vmatpush2.bf16.xpose.msra.mxu0 0
        %1381 = vmatprep.subr.bf16.mxu0 0
        %1382 = vmatpush2.bf16.xpose.msra.mxu0 0
        %1383 = vmatprep.mubr.bf16.mxu0 0
        %1384 = vmatmul.mubr.bf16.gmra.mxu0 %v1346
        %v1385 = vpop.f32.mrf.mxu0
        %v1386 = vadd.f32 %v1220, %v1385
        %v1387 = vpop.f32.mrf.mxu0
        %v1388 = vpop.f32.mrf.mxu0
        %v1389 = vadd.f32 %v1220, %v1388
        %v1390 = vpop.f32.mrf.mxu0
        %1391 = vdwg.mxu0
        %v1392 = vsel %vm1270, %v1386, -inf
        %1393 = vmax.xlane.f32.xlu0 %v1392
        %v1394 = vpop.xlane.xlu0 %1393
        %v1395 = vsel %vm1270, %v1389, -inf
        %1396 = vmax.xlane.f32.xlu0 %v1395
        %v1397 = vpop.xlane.xlu0 %1396
        %v1398 = vsub.f32 %v1386, %v1394
        %v1399 = vsub.f32 %v1389, %v1397
        %v1400 = vmul.f32 %v1398, 1.442695
        %v1401 = vpow.pop %v1400
        %v1402 = vmul.f32 %v1399, 1.442695
        %v1403 = vpow.pop %v1402
        %v1404 = vsel %vm1270, %v1401, 0.0
        %1405 = vadd.xlane.f32.xlu0 %v1404
        %v1406 = vpop.xlane.xlu0 %1405
        %v1407 = vsel %vm1270, %v1403, 0.0
        %1408 = vadd.xlane.f32.xlu0 %v1407
        %v1409 = vpop.xlane.xlu0 %1408
        %v1410 = vrcp.pop %v1406
        %v1411 = vrcp.pop %v1409
        %v1412 = vmul.f32 %v1401, %v1410
        %v1413 = vmul.f32 %v1403, %v1411
        %v1414 = vpack.c.bf16 %v1413, %v1412
        %1416 = vrot.lane.b32.xlu0 %v1215, 96
        %v1417 = vpop.permute.xlu0 %1416
        %v1420 = vsel %vm1270, %v1414, 0
        %1422 = vmatprep.subr.bf16.mxu0 0
        %1423 = vmatpush1.bf16.msra.mxu0 0
        %1424 = vmatprep.subr.bf16.mxu0 0
        %1425 = vmatpush1.bf16.msra.mxu0 0
        %1426 = vmatprep.subr.bf16.mxu0 0
        %1427 = vmatpush1.bf16.msra.mxu0 0
        %1428 = vmatprep.subr.bf16.mxu0 0
        %1429 = vmatpush1.bf16.msra.mxu0 0
        %1430 = vmatprep.subr.bf16.mxu0 0
        %1431 = vmatpush1.bf16.msra.mxu0 0
        %1432 = vmatprep.subr.bf16.mxu0 0
        %1433 = vmatpush1.bf16.msra.mxu0 0
        %1434 = vmatprep.subr.bf16.mxu0 0
        %1435 = vmatpush1.bf16.msra.mxu0 0
        %1436 = vmatprep.subr.bf16.mxu0 0
        %1437 = vmatpush1.bf16.msra.mxu0 %v1417
        %1438 = vmatprep.subr.bf16.mxu0 0
        %1439 = vmatpush2.bf16.msra.mxu0 0
        %1440 = vmatprep.subr.bf16.mxu0 0
        %1441 = vmatpush2.bf16.msra.mxu0 0
        %1442 = vmatprep.subr.bf16.mxu0 0
        %1443 = vmatpush2.bf16.msra.mxu0 0
        %1444 = vmatprep.subr.bf16.mxu0 0
        %1445 = vmatpush2.bf16.msra.mxu0 0
        %1446 = vmatprep.subr.bf16.mxu0 0
        %1447 = vmatpush2.bf16.msra.mxu0 0
        %1448 = vmatprep.subr.bf16.mxu0 0
        %1449 = vmatpush2.bf16.msra.mxu0 0
        %1450 = vmatprep.subr.bf16.mxu0 0
        %1451 = vmatpush2.bf16.msra.mxu0 0
        %1452 = vmatprep.subr.bf16.mxu0 0
        %1453 = vmatpush2.bf16.msra.mxu0 0
        %1454 = vmatprep.mubr.bf16.mxu0 0
        %1455 = vmatmul.mubr.bf16.gmra.mxu0 %v1420
        %v1456 = vpop.f32.mrf.mxu0
        %v1457 = vadd.f32 0.0, %v1456
        %v1458 = vpop.f32.mrf.mxu0
        %v1459 = vpop.f32.mrf.mxu0
        %v1460 = vadd.f32 0.0, %v1459
        %v1461 = vpop.f32.mrf.mxu0
        %1462 = vdwg.mxu0
        %v1463 = vpack.c.bf16 %v1460, %v1457
        %v1468 = vunpack.c.l.b16 %v1201
        %v1469 = vunpack.c.l.b16 %v1202
        %v1470 = vunpack.c.l.b16 %v1203
        %v1471 = vunpack.c.l.b16 %v1204
        %v1472 = vpack.c.b16 %v1469, %v1468
        %v1473 = vpack.c.b16 %v1471, %v1470
        %v1477 = vsel %vm1222, %v1463, 0
        %1479 = vmatprep.subr.bf16.mxu0 0
        %1480 = vmatpush1.bf16.msra.mxu0 0
        %1481 = vmatprep.subr.bf16.mxu0 0
        %1482 = vmatpush1.bf16.msra.mxu0 0
        %1483 = vmatprep.subr.bf16.mxu0 0
        %1484 = vmatpush1.bf16.msra.mxu0 0
        %1485 = vmatprep.subr.bf16.mxu0 0
        %1486 = vmatpush1.bf16.msra.mxu0 0
        %1487 = vmatprep.subr.bf16.mxu0 0
        %1488 = vmatpush1.bf16.msra.mxu0 0
        %1489 = vmatprep.subr.bf16.mxu0 0
        %1490 = vmatpush1.bf16.msra.mxu0 0
        %1491 = vmatprep.subr.bf16.mxu0 0
        %1492 = vmatpush1.bf16.msra.mxu0 %v1473
        %1493 = vmatprep.subr.bf16.mxu0 0
        %1494 = vmatpush1.bf16.msra.mxu0 %v1472
        %1495 = vmatprep.subr.bf16.mxu0 0
        %1496 = vmatpush2.bf16.msra.mxu0 0
        %1497 = vmatprep.subr.bf16.mxu0 0
        %1498 = vmatpush2.bf16.msra.mxu0 0
        %1499 = vmatprep.subr.bf16.mxu0 0
        %1500 = vmatpush2.bf16.msra.mxu0 0
        %1501 = vmatprep.subr.bf16.mxu0 0
        %1502 = vmatpush2.bf16.msra.mxu0 0
        %1503 = vmatprep.subr.bf16.mxu0 0
        %1504 = vmatpush2.bf16.msra.mxu0 0
        %1505 = vmatprep.subr.bf16.mxu0 0
        %1506 = vmatpush2.bf16.msra.mxu0 0
        %1507 = vmatprep.subr.bf16.mxu0 0
        %1508 = vmatpush2.bf16.msra.mxu0 0
        %1509 = vmatprep.subr.bf16.mxu0 0
        %1510 = vmatpush2.bf16.msra.mxu0 0
        %1511 = vmatprep.mubr.bf16.mxu0 0
        %1512 = vmatmul.mubr.bf16.gmra.mxu0 %v1477
        %v1513 = vpop.f32.mrf.mxu0
        %v1514 = vadd.f32 0.0, %v1513
        %v1515 = vpop.f32.mrf.mxu0
        %v1516 = vpop.f32.mrf.mxu0
        %v1517 = vadd.f32 0.0, %v1516
        %v1518 = vpop.f32.mrf.mxu0
        %1519 = vdwg.mxu0
        %v1524 = vunpack.c.l.b16 %v1197
        %v1525 = vunpack.c.l.b16 %v1198
        %v1526 = vunpack.c.l.b16 %v1199
        %v1527 = vunpack.c.l.b16 %v1200
        %v1528 = vpack.c.b16 %v1525, %v1524
        %v1529 = vpack.c.b16 %v1527, %v1526
        %v1533 = vsel %vm1222, %v1338, 0
        %1535 = vmatprep.subr.bf16.mxu0 0
        %1536 = vmatpush1.bf16.msra.mxu0 0
        %1537 = vmatprep.subr.bf16.mxu0 0
        %1538 = vmatpush1.bf16.msra.mxu0 0
        %1539 = vmatprep.subr.bf16.mxu0 0
        %1540 = vmatpush1.bf16.msra.mxu0 0
        %1541 = vmatprep.subr.bf16.mxu0 0
        %1542 = vmatpush1.bf16.msra.mxu0 0
        %1543 = vmatprep.subr.bf16.mxu0 0
        %1544 = vmatpush1.bf16.msra.mxu0 0
        %1545 = vmatprep.subr.bf16.mxu0 0
        %1546 = vmatpush1.bf16.msra.mxu0 0
        %1547 = vmatprep.subr.bf16.mxu0 0
        %1548 = vmatpush1.bf16.msra.mxu0 %v1529
        %1549 = vmatprep.subr.bf16.mxu0 0
        %1550 = vmatpush1.bf16.msra.mxu0 %v1528
        %1551 = vmatprep.subr.bf16.mxu0 0
        %1552 = vmatpush2.bf16.msra.mxu0 0
        %1553 = vmatprep.subr.bf16.mxu0 0
        %1554 = vmatpush2.bf16.msra.mxu0 0
        %1555 = vmatprep.subr.bf16.mxu0 0
        %1556 = vmatpush2.bf16.msra.mxu0 0
        %1557 = vmatprep.subr.bf16.mxu0 0
        %1558 = vmatpush2.bf16.msra.mxu0 0
        %1559 = vmatprep.subr.bf16.mxu0 0
        %1560 = vmatpush2.bf16.msra.mxu0 0
        %1561 = vmatprep.subr.bf16.mxu0 0
        %1562 = vmatpush2.bf16.msra.mxu0 0
        %1563 = vmatprep.subr.bf16.mxu0 0
        %1564 = vmatpush2.bf16.msra.mxu0 0
        %1565 = vmatprep.subr.bf16.mxu0 0
        %1566 = vmatpush2.bf16.msra.mxu0 0
        %1567 = vmatprep.mubr.bf16.mxu0 0
        %1568 = vmatmul.mubr.bf16.gmra.mxu0 %v1533
        %v1569 = vpop.f32.mrf.mxu0
        %v1570 = vadd.f32 %v1514, %v1569
        %v1571 = vpop.f32.mrf.mxu0
        %v1572 = vpop.f32.mrf.mxu0
        %v1573 = vadd.f32 %v1517, %v1572
        %v1574 = vpop.f32.mrf.mxu0
        %1575 = vdwg.mxu0
        %1576 = vrot.lane.b32.xlu0 %v1213, 64
        %v1577 = vpop.permute.xlu0 %1576
        %1578 = vrot.lane.b32.xlu0 %v1214, 64
        %v1579 = vpop.permute.xlu0 %1578
        %v1581 = vsel %vm1222, %v1577, 0
        %v1584 = vsel %vm1222, %v1579, 0
        %1586 = vmatprep.subr.bf16.mxu0 0
        %1587 = vmatpush1.bf16.xpose.msra.mxu0 0
        %1588 = vmatprep.subr.bf16.mxu0 0
        %1589 = vmatpush1.bf16.xpose.msra.mxu0 0
        %1590 = vmatprep.subr.bf16.mxu0 0
        %1591 = vmatpush1.bf16.xpose.msra.mxu0 0
        %1592 = vmatprep.subr.bf16.mxu0 0
        %1593 = vmatpush1.bf16.xpose.msra.mxu0 0
        %1594 = vmatprep.subr.bf16.mxu0 0
        %1595 = vmatpush1.bf16.xpose.msra.mxu0 0
        %1596 = vmatprep.subr.bf16.mxu0 0
        %1597 = vmatpush1.bf16.xpose.msra.mxu0 0
        %1598 = vmatprep.subr.bf16.mxu0 0
        %1599 = vmatpush1.bf16.xpose.msra.mxu0 0
        %1600 = vmatprep.subr.bf16.mxu0 0
        %1601 = vmatpush1.bf16.xpose.msra.mxu0 %v1584
        %1602 = vmatprep.subr.bf16.mxu0 0
        %1603 = vmatpush2.bf16.xpose.msra.mxu0 0
        %1604 = vmatprep.subr.bf16.mxu0 0
        %1605 = vmatpush2.bf16.xpose.msra.mxu0 0
        %1606 = vmatprep.subr.bf16.mxu0 0
        %1607 = vmatpush2.bf16.xpose.msra.mxu0 0
        %1608 = vmatprep.subr.bf16.mxu0 0
        %1609 = vmatpush2.bf16.xpose.msra.mxu0 0
        %1610 = vmatprep.subr.bf16.mxu0 0
        %1611 = vmatpush2.bf16.xpose.msra.mxu0 0
        %1612 = vmatprep.subr.bf16.mxu0 0
        %1613 = vmatpush2.bf16.xpose.msra.mxu0 0
        %1614 = vmatprep.subr.bf16.mxu0 0
        %1615 = vmatpush2.bf16.xpose.msra.mxu0 0
        %1616 = vmatprep.subr.bf16.mxu0 0
        %1617 = vmatpush2.bf16.xpose.msra.mxu0 0
        %1618 = vmatprep.mubr.bf16.mxu0 0
        %1619 = vmatmul.mubr.bf16.gmra.mxu0 %v1581
        %v1620 = vpop.f32.mrf.mxu0
        %v1621 = vadd.f32 %v1220, %v1620
        %v1622 = vpop.f32.mrf.mxu0
        %v1623 = vpop.f32.mrf.mxu0
        %v1624 = vadd.f32 %v1220, %v1623
        %v1625 = vpop.f32.mrf.mxu0
        %1626 = vdwg.mxu0
        %v1627 = vsel %vm1270, %v1621, -inf
        %1628 = vmax.xlane.f32.xlu0 %v1627
        %v1629 = vpop.xlane.xlu0 %1628
        %v1630 = vsel %vm1270, %v1624, -inf
        %1631 = vmax.xlane.f32.xlu0 %v1630
        %v1632 = vpop.xlane.xlu0 %1631
        %v1633 = vsub.f32 %v1621, %v1629
        %v1634 = vsub.f32 %v1624, %v1632
        %v1635 = vmul.f32 %v1633, 1.442695
        %v1636 = vpow.pop %v1635
        %v1637 = vmul.f32 %v1634, 1.442695
        %v1638 = vpow.pop %v1637
        %v1639 = vsel %vm1270, %v1636, 0.0
        %1640 = vadd.xlane.f32.xlu0 %v1639
        %v1641 = vpop.xlane.xlu0 %1640
        %v1642 = vsel %vm1270, %v1638, 0.0
        %1643 = vadd.xlane.f32.xlu0 %v1642
        %v1644 = vpop.xlane.xlu0 %1643
        %v1645 = vrcp.pop %v1641
        %v1646 = vrcp.pop %v1644
        %v1647 = vmul.f32 %v1636, %v1645
        %v1648 = vmul.f32 %v1638, %v1646
        %v1649 = vpack.c.bf16 %v1648, %v1647
        %1650 = vrot.lane.b32.xlu0 %v1215, 64
        %v1651 = vpop.permute.xlu0 %1650
        %v1654 = vsel %vm1270, %v1649, 0
        %1656 = vmatprep.subr.bf16.mxu0 0
        %1657 = vmatpush1.bf16.msra.mxu0 0
        %1658 = vmatprep.subr.bf16.mxu0 0
        %1659 = vmatpush1.bf16.msra.mxu0 0
        %1660 = vmatprep.subr.bf16.mxu0 0
        %1661 = vmatpush1.bf16.msra.mxu0 0
        %1662 = vmatprep.subr.bf16.mxu0 0
        %1663 = vmatpush1.bf16.msra.mxu0 0
        %1664 = vmatprep.subr.bf16.mxu0 0
        %1665 = vmatpush1.bf16.msra.mxu0 0
        %1666 = vmatprep.subr.bf16.mxu0 0
        %1667 = vmatpush1.bf16.msra.mxu0 0
        %1668 = vmatprep.subr.bf16.mxu0 0
        %1669 = vmatpush1.bf16.msra.mxu0 0
        %1670 = vmatprep.subr.bf16.mxu0 0
        %1671 = vmatpush1.bf16.msra.mxu0 %v1651
        %1672 = vmatprep.subr.bf16.mxu0 0
        %1673 = vmatpush2.bf16.msra.mxu0 0
        %1674 = vmatprep.subr.bf16.mxu0 0
        %1675 = vmatpush2.bf16.msra.mxu0 0
        %1676 = vmatprep.subr.bf16.mxu0 0
        %1677 = vmatpush2.bf16.msra.mxu0 0
        %1678 = vmatprep.subr.bf16.mxu0 0
        %1679 = vmatpush2.bf16.msra.mxu0 0
        %1680 = vmatprep.subr.bf16.mxu0 0
        %1681 = vmatpush2.bf16.msra.mxu0 0
        %1682 = vmatprep.subr.bf16.mxu0 0
        %1683 = vmatpush2.bf16.msra.mxu0 0
        %1684 = vmatprep.subr.bf16.mxu0 0
        %1685 = vmatpush2.bf16.msra.mxu0 0
        %1686 = vmatprep.subr.bf16.mxu0 0
        %1687 = vmatpush2.bf16.msra.mxu0 0
        %1688 = vmatprep.mubr.bf16.mxu0 0
        %1689 = vmatmul.mubr.bf16.gmra.mxu0 %v1654
        %v1690 = vpop.f32.mrf.mxu0
        %v1691 = vadd.f32 0.0, %v1690
        %v1692 = vpop.f32.mrf.mxu0
        %v1693 = vpop.f32.mrf.mxu0
        %v1694 = vadd.f32 0.0, %v1693
        %v1695 = vpop.f32.mrf.mxu0
        %1696 = vdwg.mxu0
        %v1697 = vpack.c.bf16 %v1694, %v1691
        %v1702 = vunpack.c.l.b16 %v1205
        %v1703 = vunpack.c.l.b16 %v1206
        %v1704 = vunpack.c.l.b16 %v1207
        %v1705 = vunpack.c.l.b16 %v1208
        %v1706 = vpack.c.b16 %v1703, %v1702
        %v1707 = vpack.c.b16 %v1705, %v1704
        %v1711 = vsel %vm1222, %v1697, 0
        %1713 = vmatprep.subr.bf16.mxu0 0
        %1714 = vmatpush1.bf16.msra.mxu0 0
        %1715 = vmatprep.subr.bf16.mxu0 0
        %1716 = vmatpush1.bf16.msra.mxu0 0
        %1717 = vmatprep.subr.bf16.mxu0 0
        %1718 = vmatpush1.bf16.msra.mxu0 0
        %1719 = vmatprep.subr.bf16.mxu0 0
        %1720 = vmatpush1.bf16.msra.mxu0 0
        %1721 = vmatprep.subr.bf16.mxu0 0
        %1722 = vmatpush1.bf16.msra.mxu0 0
        %1723 = vmatprep.subr.bf16.mxu0 0
        %1724 = vmatpush1.bf16.msra.mxu0 0
        %1725 = vmatprep.subr.bf16.mxu0 0
        %1726 = vmatpush1.bf16.msra.mxu0 %v1707
        %1727 = vmatprep.subr.bf16.mxu0 0
        %1728 = vmatpush1.bf16.msra.mxu0 %v1706
        %1729 = vmatprep.subr.bf16.mxu0 0
        %1730 = vmatpush2.bf16.msra.mxu0 0
        %1731 = vmatprep.subr.bf16.mxu0 0
        %1732 = vmatpush2.bf16.msra.mxu0 0
        %1733 = vmatprep.subr.bf16.mxu0 0
        %1734 = vmatpush2.bf16.msra.mxu0 0
        %1735 = vmatprep.subr.bf16.mxu0 0
        %1736 = vmatpush2.bf16.msra.mxu0 0
        %1737 = vmatprep.subr.bf16.mxu0 0
        %1738 = vmatpush2.bf16.msra.mxu0 0
        %1739 = vmatprep.subr.bf16.mxu0 0
        %1740 = vmatpush2.bf16.msra.mxu0 0
        %1741 = vmatprep.subr.bf16.mxu0 0
        %1742 = vmatpush2.bf16.msra.mxu0 0
        %1743 = vmatprep.subr.bf16.mxu0 0
        %1744 = vmatpush2.bf16.msra.mxu0 0
        %1745 = vmatprep.mubr.bf16.mxu0 0
        %1746 = vmatmul.mubr.bf16.gmra.mxu0 %v1711
        %v1747 = vpop.f32.mrf.mxu0
        %v1748 = vadd.f32 0.0, %v1747
        %v1749 = vpop.f32.mrf.mxu0
        %v1750 = vpop.f32.mrf.mxu0
        %v1751 = vadd.f32 0.0, %v1750
        %v1752 = vpop.f32.mrf.mxu0
        %1753 = vdwg.mxu0
        %v1754 = vadd.f32 %v1570, %v1748
        %v1755 = vadd.f32 %v1573, %v1751
        %1756 = vrot.lane.b32.xlu0 %v1213, 32
        %v1757 = vpop.permute.xlu0 %1756
        %1758 = vrot.lane.b32.xlu0 %v1214, 32
        %v1759 = vpop.permute.xlu0 %1758
        %v1761 = vsel %vm1222, %v1757, 0
        %v1764 = vsel %vm1222, %v1759, 0
        %1766 = vmatprep.subr.bf16.mxu0 0
        %1767 = vmatpush1.bf16.xpose.msra.mxu0 0
        %1768 = vmatprep.subr.bf16.mxu0 0
        %1769 = vmatpush1.bf16.xpose.msra.mxu0 0
        %1770 = vmatprep.subr.bf16.mxu0 0
        %1771 = vmatpush1.bf16.xpose.msra.mxu0 0
        %1772 = vmatprep.subr.bf16.mxu0 0
        %1773 = vmatpush1.bf16.xpose.msra.mxu0 0
        %1774 = vmatprep.subr.bf16.mxu0 0
        %1775 = vmatpush1.bf16.xpose.msra.mxu0 0
        %1776 = vmatprep.subr.bf16.mxu0 0
        %1777 = vmatpush1.bf16.xpose.msra.mxu0 0
        %1778 = vmatprep.subr.bf16.mxu0 0
        %1779 = vmatpush1.bf16.xpose.msra.mxu0 0
        %1780 = vmatprep.subr.bf16.mxu0 0
        %1781 = vmatpush1.bf16.xpose.msra.mxu0 %v1764
        %1782 = vmatprep.subr.bf16.mxu0 0
        %1783 = vmatpush2.bf16.xpose.msra.mxu0 0
        %1784 = vmatprep.subr.bf16.mxu0 0
        %1785 = vmatpush2.bf16.xpose.msra.mxu0 0
        %1786 = vmatprep.subr.bf16.mxu0 0
        %1787 = vmatpush2.bf16.xpose.msra.mxu0 0
        %1788 = vmatprep.subr.bf16.mxu0 0
        %1789 = vmatpush2.bf16.xpose.msra.mxu0 0
        %1790 = vmatprep.subr.bf16.mxu0 0
        %1791 = vmatpush2.bf16.xpose.msra.mxu0 0
        %1792 = vmatprep.subr.bf16.mxu0 0
        %1793 = vmatpush2.bf16.xpose.msra.mxu0 0
        %1794 = vmatprep.subr.bf16.mxu0 0
        %1795 = vmatpush2.bf16.xpose.msra.mxu0 0
        %1796 = vmatprep.subr.bf16.mxu0 0
        %1797 = vmatpush2.bf16.xpose.msra.mxu0 0
        %1798 = vmatprep.mubr.bf16.mxu0 0
        %1799 = vmatmul.mubr.bf16.gmra.mxu0 %v1761
        %v1800 = vpop.f32.mrf.mxu0
        %v1801 = vadd.f32 %v1220, %v1800
        %v1802 = vpop.f32.mrf.mxu0
        %v1803 = vpop.f32.mrf.mxu0
        %v1804 = vadd.f32 %v1220, %v1803
        %v1805 = vpop.f32.mrf.mxu0
        %1806 = vdwg.mxu0
        %v1807 = vsel %vm1270, %v1801, -inf
        %1808 = vmax.xlane.f32.xlu0 %v1807
        %v1809 = vpop.xlane.xlu0 %1808
        %v1810 = vsel %vm1270, %v1804, -inf
        %1811 = vmax.xlane.f32.xlu0 %v1810
        %v1812 = vpop.xlane.xlu0 %1811
        %v1813 = vsub.f32 %v1801, %v1809
        %v1814 = vsub.f32 %v1804, %v1812
        %v1815 = vmul.f32 %v1813, 1.442695
        %v1816 = vpow.pop %v1815
        %v1817 = vmul.f32 %v1814, 1.442695
        %v1818 = vpow.pop %v1817
        %v1819 = vsel %vm1270, %v1816, 0.0
        %1820 = vadd.xlane.f32.xlu0 %v1819
        %v1821 = vpop.xlane.xlu0 %1820
        %v1822 = vsel %vm1270, %v1818, 0.0
        %1823 = vadd.xlane.f32.xlu0 %v1822
        %v1824 = vpop.xlane.xlu0 %1823
        %v1825 = vrcp.pop %v1821
        %v1826 = vrcp.pop %v1824
        %v1827 = vmul.f32 %v1816, %v1825
        %v1828 = vmul.f32 %v1818, %v1826
        %v1829 = vpack.c.bf16 %v1828, %v1827
        %1830 = vrot.lane.b32.xlu0 %v1215, 32
        %v1831 = vpop.permute.xlu0 %1830
        %v1834 = vsel %vm1270, %v1829, 0
        %1836 = vmatprep.subr.bf16.mxu0 0
        %1837 = vmatpush1.bf16.msra.mxu0 0
        %1838 = vmatprep.subr.bf16.mxu0 0
        %1839 = vmatpush1.bf16.msra.mxu0 0
        %1840 = vmatprep.subr.bf16.mxu0 0
        %1841 = vmatpush1.bf16.msra.mxu0 0
        %1842 = vmatprep.subr.bf16.mxu0 0
        %1843 = vmatpush1.bf16.msra.mxu0 0
        %1844 = vmatprep.subr.bf16.mxu0 0
        %1845 = vmatpush1.bf16.msra.mxu0 0
        %1846 = vmatprep.subr.bf16.mxu0 0
        %1847 = vmatpush1.bf16.msra.mxu0 0
        %1848 = vmatprep.subr.bf16.mxu0 0
        %1849 = vmatpush1.bf16.msra.mxu0 0
        %1850 = vmatprep.subr.bf16.mxu0 0
        %1851 = vmatpush1.bf16.msra.mxu0 %v1831
        %1852 = vmatprep.subr.bf16.mxu0 0
        %1853 = vmatpush2.bf16.msra.mxu0 0
        %1854 = vmatprep.subr.bf16.mxu0 0
        %1855 = vmatpush2.bf16.msra.mxu0 0
        %1856 = vmatprep.subr.bf16.mxu0 0
        %1857 = vmatpush2.bf16.msra.mxu0 0
        %1858 = vmatprep.subr.bf16.mxu0 0
        %1859 = vmatpush2.bf16.msra.mxu0 0
        %1860 = vmatprep.subr.bf16.mxu0 0
        %1861 = vmatpush2.bf16.msra.mxu0 0
        %1862 = vmatprep.subr.bf16.mxu0 0
        %1863 = vmatpush2.bf16.msra.mxu0 0
        %1864 = vmatprep.subr.bf16.mxu0 0
        %1865 = vmatpush2.bf16.msra.mxu0 0
        %1866 = vmatprep.subr.bf16.mxu0 0
        %1867 = vmatpush2.bf16.msra.mxu0 0
        %1868 = vmatprep.mubr.bf16.mxu0 0
        %1869 = vmatmul.mubr.bf16.gmra.mxu0 %v1834
        %v1870 = vpop.f32.mrf.mxu0
        %v1871 = vadd.f32 0.0, %v1870
        %v1872 = vpop.f32.mrf.mxu0
        %v1873 = vpop.f32.mrf.mxu0
        %v1874 = vadd.f32 0.0, %v1873
        %v1875 = vpop.f32.mrf.mxu0
        %1876 = vdwg.mxu0
        %v1877 = vpack.c.bf16 %v1874, %v1871
        %v1882 = vunpack.c.l.b16 %v1209
        %v1883 = vunpack.c.l.b16 %v1210
        %v1884 = vunpack.c.l.b16 %v1211
        %v1885 = vunpack.c.l.b16 %v1212
        %v1886 = vpack.c.b16 %v1883, %v1882
        %v1887 = vpack.c.b16 %v1885, %v1884
        %v1891 = vsel %vm1222, %v1877, 0
        %1893 = vmatprep.subr.bf16.mxu0 0
        %1894 = vmatpush1.bf16.msra.mxu0 0
        %1895 = vmatprep.subr.bf16.mxu0 0
        %1896 = vmatpush1.bf16.msra.mxu0 0
        %1897 = vmatprep.subr.bf16.mxu0 0
        %1898 = vmatpush1.bf16.msra.mxu0 0
        %1899 = vmatprep.subr.bf16.mxu0 0
        %1900 = vmatpush1.bf16.msra.mxu0 0
        %1901 = vmatprep.subr.bf16.mxu0 0
        %1902 = vmatpush1.bf16.msra.mxu0 0
        %1903 = vmatprep.subr.bf16.mxu0 0
        %1904 = vmatpush1.bf16.msra.mxu0 0
        %1905 = vmatprep.subr.bf16.mxu0 0
        %1906 = vmatpush1.bf16.msra.mxu0 %v1887
        %1907 = vmatprep.subr.bf16.mxu0 0
        %1908 = vmatpush1.bf16.msra.mxu0 %v1886
        %1909 = vmatprep.subr.bf16.mxu0 0
        %1910 = vmatpush2.bf16.msra.mxu0 0
        %1911 = vmatprep.subr.bf16.mxu0 0
        %1912 = vmatpush2.bf16.msra.mxu0 0
        %1913 = vmatprep.subr.bf16.mxu0 0
        %1914 = vmatpush2.bf16.msra.mxu0 0
        %1915 = vmatprep.subr.bf16.mxu0 0
        %1916 = vmatpush2.bf16.msra.mxu0 0
        %1917 = vmatprep.subr.bf16.mxu0 0
        %1918 = vmatpush2.bf16.msra.mxu0 0
        %1919 = vmatprep.subr.bf16.mxu0 0
        %1920 = vmatpush2.bf16.msra.mxu0 0
        %1921 = vmatprep.subr.bf16.mxu0 0
        %1922 = vmatpush2.bf16.msra.mxu0 0
        %1923 = vmatprep.subr.bf16.mxu0 0
        %1924 = vmatpush2.bf16.msra.mxu0 0
        %1925 = vmatprep.mubr.bf16.mxu0 0
        %1926 = vmatmul.mubr.bf16.gmra.mxu0 %v1891
        %v1927 = vpop.f32.mrf.mxu0
        %v1928 = vadd.f32 0.0, %v1927
        %v1929 = vpop.f32.mrf.mxu0
        %v1930 = vpop.f32.mrf.mxu0
        %v1931 = vadd.f32 0.0, %v1930
        %v1932 = vpop.f32.mrf.mxu0
        %1933 = vdwg.mxu0
        %v1934 = vadd.f32 %v1754, %v1928
        %v1935 = vadd.f32 %v1755, %v1931
        %v1936 = vld [vmem:[%s847] sm:$0x1]
        %v1938 = vlaneseq
        %v1939 = vshrl.u32 %v1938, 7
        %v1940 = vsub.s32 0, %v1939
        %v1941 = vrot.slane %v1936, %v1940
        %v1943 = vadd.f32 %v1934, %v1941
        %v1944 = vadd.f32 %v1935, %v1941
        %v1945 = vunpack.c.l.bf16 %v927
        %v1946 = vunpack.c.l.bf16 %v928
        %v1947 = vadd.f32 %v1943, %v1945
        %v1948 = vadd.f32 %v1944, %v1946
        %v1949 = vld [vmem:[%s850] sm:$0x1]
        %v1950 = vld [vmem:[%s853] sm:$0x1]
        %1951 = vadd.xlane.f32.xlu0 %v1947
        %v1952 = vpop.xlane.xlu0 %1951
        %1953 = vadd.xlane.f32.xlu0 %v1948
        %v1954 = vpop.xlane.xlu0 %1953
        %v1955 = vrcp.pop 128.0
        %v1956 = vmul.f32 %v1952, %v1955
        %v1957 = vmul.f32 %v1954, %v1955
        %v1958 = vsub.f32 %v1947, %v1956
        %v1959 = vsub.f32 %v1948, %v1957
        %v1960 = vmul.f32 %v1958, %v1958
        %v1961 = vmul.f32 %v1959, %v1959
        %1962 = vadd.xlane.f32.xlu0 %v1960
        %v1963 = vpop.xlane.xlu0 %1962
        %1964 = vadd.xlane.f32.xlu0 %v1961
        %v1965 = vpop.xlane.xlu0 %1964
        %v1966 = vmul.f32 %v1963, %v1955
        %v1967 = vmul.f32 %v1965, %v1955
        %v1968 = vadd.f32 %v1966, 1e-12
        %v1969 = vadd.f32 %v1967, 1e-12
        %v1970 = vrsqrt.pop %v1968
        %v1971 = vrsqrt.pop %v1969
        %v1972 = vmul.f32 %v1958, %v1970
        %v1973 = vmul.f32 %v1959, %v1971
        %v1975 = vlaneseq
        %v1976 = vshrl.u32 %v1975, 7
        %v1977 = vsub.s32 0, %v1976
        %v1978 = vrot.slane %v1949, %v1977
        %v1980 = vmul.f32 %v1972, %v1978
        %v1981 = vmul.f32 %v1973, %v1978
        %v1983 = vlaneseq
        %v1984 = vshrl.u32 %v1983, 7
        %v1985 = vsub.s32 0, %v1984
        %v1986 = vrot.slane %v1950, %v1985
        %v1988 = vadd.f32 %v1980, %v1986
        %v1989 = vadd.f32 %v1981, %v1986
        %v1990 = vpack.c.bf16 %v1989, %v1988
        %v1991 = vld [vmem:[%s714] sm:$0xff]
        %v1992 = vld [vmem:[%s714 + $0x8] sm:$0xff]
        %v1993 = vld [vmem:[%s714 + $0x10] sm:$0xff]
        %v1994 = vld [vmem:[%s714 + $0x18] sm:$0xff]
        %v1995 = vld [vmem:[%s714 + $0x20] sm:$0xff]
        %v1996 = vld [vmem:[%s714 + $0x28] sm:$0xff]
        %v1997 = vld [vmem:[%s714 + $0x30] sm:$0xff]
        %v1998 = vld [vmem:[%s714 + $0x38] sm:$0xff]
        %v1999 = vld [vmem:[%s714 + $0x40] sm:$0xff]
        %v2000 = vld [vmem:[%s714 + $0x48] sm:$0xff]
        %v2001 = vld [vmem:[%s714 + $0x50] sm:$0xff]
        %v2002 = vld [vmem:[%s714 + $0x58] sm:$0xff]
        %v2003 = vld [vmem:[%s714 + $0x60] sm:$0xff]
        %v2004 = vld [vmem:[%s714 + $0x68] sm:$0xff]
        %v2005 = vld [vmem:[%s714 + $0x70] sm:$0xff]
        %v2006 = vld [vmem:[%s714 + $0x78] sm:$0xff]
        %v2007 = vld [vmem:[%s857] sm:$0x3]
        %v2009 = vlaneseq
        %v2010 = vshrl.u32 %v2009, 7
        %v2011 = vsub.s32 0, %v2010
        %v2012 = vrot.slane %v2007, %v2011
        %v2013 = vlaneseq
        %v2014 = vshrl.u32 %v2013, 7
        %v2015 = vsub.s32 1, %v2014
        %v2016 = vrot.slane %v2007, %v2015
        %v2035 = vunpack.c.l.b16 %v1991
        %v2036 = vunpack.c.h.b16 %v1991
        %v2037 = vunpack.c.l.b16 %v1992
        %v2038 = vunpack.c.h.b16 %v1992
        %v2039 = vunpack.c.l.b16 %v1993
        %v2040 = vunpack.c.h.b16 %v1993
        %v2041 = vunpack.c.l.b16 %v1994
        %v2042 = vunpack.c.h.b16 %v1994
        %v2043 = vunpack.c.l.b16 %v1995
        %v2044 = vunpack.c.h.b16 %v1995
        %v2045 = vunpack.c.l.b16 %v1996
        %v2046 = vunpack.c.h.b16 %v1996
        %v2047 = vunpack.c.l.b16 %v1997
        %v2048 = vunpack.c.h.b16 %v1997
        %v2049 = vunpack.c.l.b16 %v1998
        %v2050 = vunpack.c.h.b16 %v1998
        %v2051 = vunpack.c.l.b16 %v1999
        %v2052 = vunpack.c.h.b16 %v1999
        %v2053 = vunpack.c.l.b16 %v2000
        %v2054 = vunpack.c.h.b16 %v2000
        %v2055 = vunpack.c.l.b16 %v2001
        %v2056 = vunpack.c.h.b16 %v2001
        %v2057 = vunpack.c.l.b16 %v2002
        %v2058 = vunpack.c.h.b16 %v2002
        %v2059 = vunpack.c.l.b16 %v2003
        %v2060 = vunpack.c.h.b16 %v2003
        %v2061 = vunpack.c.l.b16 %v2004
        %v2062 = vunpack.c.h.b16 %v2004
        %v2063 = vunpack.c.l.b16 %v2005
        %v2064 = vunpack.c.h.b16 %v2005
        %v2065 = vunpack.c.l.b16 %v2006
        %v2066 = vunpack.c.h.b16 %v2006
        %v2067 = vpack.c.b16 %v2037, %v2035
        %v2068 = vpack.c.b16 %v2038, %v2036
        %v2069 = vpack.c.b16 %v2041, %v2039
        %v2070 = vpack.c.b16 %v2042, %v2040
        %v2071 = vpack.c.b16 %v2045, %v2043
        %v2072 = vpack.c.b16 %v2046, %v2044
        %v2073 = vpack.c.b16 %v2049, %v2047
        %v2074 = vpack.c.b16 %v2050, %v2048
        %v2075 = vpack.c.b16 %v2053, %v2051
        %v2076 = vpack.c.b16 %v2054, %v2052
        %v2077 = vpack.c.b16 %v2057, %v2055
        %v2078 = vpack.c.b16 %v2058, %v2056
        %v2079 = vpack.c.b16 %v2061, %v2059
        %v2080 = vpack.c.b16 %v2062, %v2060
        %v2081 = vpack.c.b16 %v2065, %v2063
        %v2082 = vpack.c.b16 %v2066, %v2064
        %2099 = vmatprep.subr.bf16.mxu0 %v2082
        %2100 = vmatpush1.bf16.msra.mxu0 %v2081
        %2101 = vmatprep.subr.bf16.mxu0 %v2080
        %2102 = vmatpush1.bf16.msra.mxu0 %v2079
        %2103 = vmatprep.subr.bf16.mxu0 %v2078
        %2104 = vmatpush1.bf16.msra.mxu0 %v2077
        %2105 = vmatprep.subr.bf16.mxu0 %v2076
        %2106 = vmatpush1.bf16.msra.mxu0 %v2075
        %2107 = vmatprep.subr.bf16.mxu0 %v2074
        %2108 = vmatpush1.bf16.msra.mxu0 %v2073
        %2109 = vmatprep.subr.bf16.mxu0 %v2072
        %2110 = vmatpush1.bf16.msra.mxu0 %v2071
        %2111 = vmatprep.subr.bf16.mxu0 %v2070
        %2112 = vmatpush1.bf16.msra.mxu0 %v2069
        %2113 = vmatprep.subr.bf16.mxu0 %v2068
        %2114 = vmatpush1.bf16.msra.mxu0 %v2067
        %2115 = vmatprep.subr.bf16.mxu0 0
        %2116 = vmatpush2.bf16.msra.mxu0 0
        %2117 = vmatprep.subr.bf16.mxu0 0
        %2118 = vmatpush2.bf16.msra.mxu0 0
        %2119 = vmatprep.subr.bf16.mxu0 0
        %2120 = vmatpush2.bf16.msra.mxu0 0
        %2121 = vmatprep.subr.bf16.mxu0 0
        %2122 = vmatpush2.bf16.msra.mxu0 0
        %2123 = vmatprep.subr.bf16.mxu0 0
        %2124 = vmatpush2.bf16.msra.mxu0 0
        %2125 = vmatprep.subr.bf16.mxu0 0
        %2126 = vmatpush2.bf16.msra.mxu0 0
        %2127 = vmatprep.subr.bf16.mxu0 0
        %2128 = vmatpush2.bf16.msra.mxu0 0
        %2129 = vmatprep.subr.bf16.mxu0 0
        %2130 = vmatpush2.bf16.msra.mxu0 0
        %2131 = vmatprep.mubr.bf16.mxu0 0
        %2132 = vmatmul.mubr.bf16.gmra.mxu0 %v1990
        %v2133 = vpop.f32.mrf.mxu0
        %v2134 = vadd.f32 %v2012, %v2133
        %v2135 = vpop.f32.mrf.mxu0
        %v2136 = vadd.f32 %v2016, %v2135
        %v2137 = vpop.f32.mrf.mxu0
        %v2138 = vadd.f32 %v2012, %v2137
        %v2139 = vpop.f32.mrf.mxu0
        %v2140 = vadd.f32 %v2016, %v2139
        %2141 = vdwg.mxu0
        %v2142 = vmul.f32 %v2134, 0.5
        %v2143 = vmul.f32 %v2136, 0.5
        %v2144 = vmul.f32 %v2138, 0.5
        %v2145 = vmul.f32 %v2140, 0.5
        %v2146 = vmul.f32 %v2134, 0.044715
        %v2147 = vmul.f32 %v2136, 0.044715
        %v2148 = vmul.f32 %v2138, 0.044715
        %v2149 = vmul.f32 %v2140, 0.044715
        %v2150 = vmul.f32 %v2146, %v2134
        %v2151 = vmul.f32 %v2147, %v2136
        %v2152 = vmul.f32 %v2148, %v2138
        %v2153 = vmul.f32 %v2149, %v2140
        %v2154 = vmul.f32 %v2150, %v2134
        %v2155 = vmul.f32 %v2151, %v2136
        %v2156 = vmul.f32 %v2152, %v2138
        %v2157 = vmul.f32 %v2153, %v2140
        %v2158 = vadd.f32 %v2134, %v2154
        %v2159 = vadd.f32 %v2136, %v2155
        %v2160 = vadd.f32 %v2138, %v2156
        %v2161 = vadd.f32 %v2140, %v2157
        %v2162 = vmul.f32 %v2158, 0.7978846
        %v2163 = vmul.f32 %v2159, 0.7978846
        %v2164 = vmul.f32 %v2160, 0.7978846
        %v2165 = vmul.f32 %v2161, 0.7978846
        %v2166 = vtanh.pop %v2162
        %v2167 = vtanh.pop %v2163
        %v2168 = vtanh.pop %v2164
        %v2169 = vtanh.pop %v2165
        %v2170 = vadd.f32 %v2166, 1.0
        %v2171 = vadd.f32 %v2167, 1.0
        %v2172 = vadd.f32 %v2168, 1.0
        %v2173 = vadd.f32 %v2169, 1.0
        %v2174 = vmul.f32 %v2142, %v2170
        %v2175 = vmul.f32 %v2143, %v2171
        %v2176 = vmul.f32 %v2144, %v2172
        %v2177 = vmul.f32 %v2145, %v2173
        %v2178 = vpack.c.bf16 %v2176, %v2174
        %v2179 = vpack.c.bf16 %v2177, %v2175
        %v2180 = vld [vmem:[%s723] sm:$0xf]
        %v2181 = vld [vmem:[%s723 + $0x4] sm:$0xf]
        %v2182 = vld [vmem:[%s723 + $0x8] sm:$0xf]
        %v2183 = vld [vmem:[%s723 + $0xc] sm:$0xf]
        %v2184 = vld [vmem:[%s723 + $0x10] sm:$0xf]
        %v2185 = vld [vmem:[%s723 + $0x14] sm:$0xf]
        %v2186 = vld [vmem:[%s723 + $0x18] sm:$0xf]
        %v2187 = vld [vmem:[%s723 + $0x1c] sm:$0xf]
        %v2188 = vld [vmem:[%s723 + $0x20] sm:$0xf]
        %v2189 = vld [vmem:[%s723 + $0x24] sm:$0xf]
        %v2190 = vld [vmem:[%s723 + $0x28] sm:$0xf]
        %v2191 = vld [vmem:[%s723 + $0x2c] sm:$0xf]
        %v2192 = vld [vmem:[%s723 + $0x30] sm:$0xf]
        %v2193 = vld [vmem:[%s723 + $0x34] sm:$0xf]
        %v2194 = vld [vmem:[%s723 + $0x38] sm:$0xf]
        %v2195 = vld [vmem:[%s723 + $0x3c] sm:$0xf]
        %v2196 = vld [vmem:[%s723 + $0x40] sm:$0xf]
        %v2197 = vld [vmem:[%s723 + $0x44] sm:$0xf]
        %v2198 = vld [vmem:[%s723 + $0x48] sm:$0xf]
        %v2199 = vld [vmem:[%s723 + $0x4c] sm:$0xf]
        %v2200 = vld [vmem:[%s723 + $0x50] sm:$0xf]
        %v2201 = vld [vmem:[%s723 + $0x54] sm:$0xf]
        %v2202 = vld [vmem:[%s723 + $0x58] sm:$0xf]
        %v2203 = vld [vmem:[%s723 + $0x5c] sm:$0xf]
        %v2204 = vld [vmem:[%s723 + $0x60] sm:$0xf]
        %v2205 = vld [vmem:[%s723 + $0x64] sm:$0xf]
        %v2206 = vld [vmem:[%s723 + $0x68] sm:$0xf]
        %v2207 = vld [vmem:[%s723 + $0x6c] sm:$0xf]
        %v2208 = vld [vmem:[%s723 + $0x70] sm:$0xf]
        %v2209 = vld [vmem:[%s723 + $0x74] sm:$0xf]
        %v2210 = vld [vmem:[%s723 + $0x78] sm:$0xf]
        %v2211 = vld [vmem:[%s723 + $0x7c] sm:$0xf]
        %v2212 = vld [vmem:[%s860] sm:$0x1]
        %v2214 = vlaneseq
        %v2215 = vshrl.u32 %v2214, 7
        %v2216 = vsub.s32 0, %v2215
        %v2217 = vrot.slane %v2212, %v2216
        %v2251 = vunpack.c.l.b16 %v2180
        %v2252 = vunpack.c.l.b16 %v2181
        %v2253 = vunpack.c.l.b16 %v2182
        %v2254 = vunpack.c.l.b16 %v2183
        %v2255 = vunpack.c.l.b16 %v2184
        %v2256 = vunpack.c.l.b16 %v2185
        %v2257 = vunpack.c.l.b16 %v2186
        %v2258 = vunpack.c.l.b16 %v2187
        %v2259 = vunpack.c.l.b16 %v2188
        %v2260 = vunpack.c.l.b16 %v2189
        %v2261 = vunpack.c.l.b16 %v2190
        %v2262 = vunpack.c.l.b16 %v2191
        %v2263 = vunpack.c.l.b16 %v2192
        %v2264 = vunpack.c.l.b16 %v2193
        %v2265 = vunpack.c.l.b16 %v2194
        %v2266 = vunpack.c.l.b16 %v2195
        %v2267 = vunpack.c.l.b16 %v2196
        %v2268 = vunpack.c.l.b16 %v2197
        %v2269 = vunpack.c.l.b16 %v2198
        %v2270 = vunpack.c.l.b16 %v2199
        %v2271 = vunpack.c.l.b16 %v2200
        %v2272 = vunpack.c.l.b16 %v2201
        %v2273 = vunpack.c.l.b16 %v2202
        %v2274 = vunpack.c.l.b16 %v2203
        %v2275 = vunpack.c.l.b16 %v2204
        %v2276 = vunpack.c.l.b16 %v2205
        %v2277 = vunpack.c.l.b16 %v2206
        %v2278 = vunpack.c.l.b16 %v2207
        %v2279 = vunpack.c.l.b16 %v2208
        %v2280 = vunpack.c.l.b16 %v2209
        %v2281 = vunpack.c.l.b16 %v2210
        %v2282 = vunpack.c.l.b16 %v2211
        %v2283 = vpack.c.b16 %v2252, %v2251
        %v2284 = vpack.c.b16 %v2254, %v2253
        %v2285 = vpack.c.b16 %v2256, %v2255
        %v2286 = vpack.c.b16 %v2258, %v2257
        %v2287 = vpack.c.b16 %v2260, %v2259
        %v2288 = vpack.c.b16 %v2262, %v2261
        %v2289 = vpack.c.b16 %v2264, %v2263
        %v2290 = vpack.c.b16 %v2266, %v2265
        %v2291 = vpack.c.b16 %v2268, %v2267
        %v2292 = vpack.c.b16 %v2270, %v2269
        %v2293 = vpack.c.b16 %v2272, %v2271
        %v2294 = vpack.c.b16 %v2274, %v2273
        %v2295 = vpack.c.b16 %v2276, %v2275
        %v2296 = vpack.c.b16 %v2278, %v2277
        %v2297 = vpack.c.b16 %v2280, %v2279
        %v2298 = vpack.c.b16 %v2282, %v2281
        %2315 = vmatprep.subr.bf16.mxu0 0
        %2316 = vmatpush1.bf16.msra.mxu0 %v2290
        %2317 = vmatprep.subr.bf16.mxu0 0
        %2318 = vmatpush1.bf16.msra.mxu0 %v2289
        %2319 = vmatprep.subr.bf16.mxu0 0
        %2320 = vmatpush1.bf16.msra.mxu0 %v2288
        %2321 = vmatprep.subr.bf16.mxu0 0
        %2322 = vmatpush1.bf16.msra.mxu0 %v2287
        %2323 = vmatprep.subr.bf16.mxu0 0
        %2324 = vmatpush1.bf16.msra.mxu0 %v2286
        %2325 = vmatprep.subr.bf16.mxu0 0
        %2326 = vmatpush1.bf16.msra.mxu0 %v2285
        %2327 = vmatprep.subr.bf16.mxu0 0
        %2328 = vmatpush1.bf16.msra.mxu0 %v2284
        %2329 = vmatprep.subr.bf16.mxu0 0
        %2330 = vmatpush1.bf16.msra.mxu0 %v2283
        %2331 = vmatprep.subr.bf16.mxu0 0
        %2332 = vmatpush2.bf16.msra.mxu0 %v2298
        %2333 = vmatprep.subr.bf16.mxu0 0
        %2334 = vmatpush2.bf16.msra.mxu0 %v2297
        %2335 = vmatprep.subr.bf16.mxu0 0
        %2336 = vmatpush2.bf16.msra.mxu0 %v2296
        %2337 = vmatprep.subr.bf16.mxu0 0
        %2338 = vmatpush2.bf16.msra.mxu0 %v2295
        %2339 = vmatprep.subr.bf16.mxu0 0
        %2340 = vmatpush2.bf16.msra.mxu0 %v2294
        %2341 = vmatprep.subr.bf16.mxu0 0
        %2342 = vmatpush2.bf16.msra.mxu0 %v2293
        %2343 = vmatprep.subr.bf16.mxu0 0
        %2344 = vmatpush2.bf16.msra.mxu0 %v2292
        %2345 = vmatprep.subr.bf16.mxu0 0
        %2346 = vmatpush2.bf16.msra.mxu0 %v2291
        %2347 = vmatprep.mubr.bf16.mxu0 %v2179
        %2348 = vmatmul.mubr.bf16.gmra.mxu0 %v2178
        %v2349 = vpop.f32.mrf.mxu0
        %v2350 = vadd.f32 %v2217, %v2349
        %v2351 = vpop.f32.mrf.mxu0
        %v2352 = vpop.f32.mrf.mxu0
        %v2353 = vadd.f32 %v2217, %v2352
        %v2354 = vpop.f32.mrf.mxu0
        %2355 = vdwg.mxu0
        %v2356 = vadd.f32 %v2350, %v1988
        %v2357 = vadd.f32 %v2353, %v1989
        %v2358 = vld [vmem:[%s863] sm:$0x1]
        %v2359 = vld [vmem:[%s866] sm:$0x1]
        %2360 = vadd.xlane.f32.xlu0 %v2356
        %v2361 = vpop.xlane.xlu0 %2360
        %2362 = vadd.xlane.f32.xlu0 %v2357
        %v2363 = vpop.xlane.xlu0 %2362
        %v2364 = vmul.f32 %v2361, %v1955
        %v2365 = vmul.f32 %v2363, %v1955
        %v2366 = vsub.f32 %v2356, %v2364
        %v2367 = vsub.f32 %v2357, %v2365
        %v2368 = vmul.f32 %v2366, %v2366
        %v2369 = vmul.f32 %v2367, %v2367
        %2370 = vadd.xlane.f32.xlu0 %v2368
        %v2371 = vpop.xlane.xlu0 %2370
        %2372 = vadd.xlane.f32.xlu0 %v2369
        %v2373 = vpop.xlane.xlu0 %2372
        %v2374 = vmul.f32 %v2371, %v1955
        %v2375 = vmul.f32 %v2373, %v1955
        %v2376 = vadd.f32 %v2374, 1e-12
        %v2377 = vadd.f32 %v2375, 1e-12
        %v2378 = vrsqrt.pop %v2376
        %v2379 = vrsqrt.pop %v2377
        %v2380 = vmul.f32 %v2366, %v2378
        %v2381 = vmul.f32 %v2367, %v2379
        %v2383 = vlaneseq
        %v2384 = vshrl.u32 %v2383, 7
        %v2385 = vsub.s32 0, %v2384
        %v2386 = vrot.slane %v2358, %v2385
        %v2388 = vmul.f32 %v2380, %v2386
        %v2389 = vmul.f32 %v2381, %v2386
        %v2391 = vlaneseq
        %v2392 = vshrl.u32 %v2391, 7
        %v2393 = vsub.s32 0, %v2392
        %v2394 = vrot.slane %v2359, %v2393
        %v2396 = vadd.f32 %v2388, %v2394
        %v2397 = vadd.f32 %v2389, %v2394
        %v2398 = vpack.c.bf16 %v2397, %v2396
        %v2400 = vunpack.c.l.b16 %v2398
        %v2401 = vunpack.c.h.b16 %v2398
        %v2402 = vpack.c.b16 %v2400, %v2400
        %v2403 = vpack.c.b16 %v2401, %v2401
        %2406 = vst [vmem:[#allocation2] sm:$0xf] %v2402
        %2407 = vst [vmem:[#allocation2 + $0x4] sm:$0xf] %v2403
        %p2408 = scmp.eq.s32.totalorder %s44, 1
        // Predicated region
        $region113: #{student_forward.1} parent=91 // pred_check
          %p2409 = pneg %p2408
        $region114: #{student_forward.1} parent=91 // pred_check_branch
          %2411 = sbr.rel (%p2409) target = $region116
        $region115: #{student_forward.1} parent=91 // pred_region
          %v2412 = vadd.f32 %v2396, %v2397
          %v2413 = vrot.slane %v2412, 4
          %v2414 = vadd.f32 %v2412, %v2413
          %v2415 = vrot.slane %v2414, 2
          %v2416 = vadd.f32 %v2414, %v2415
          %v2417 = vrot.slane %v2416, 1
          %v2418 = vadd.f32 %v2416, %v2417
          %v2419 = vmul.f32 %v2418, 0.0625
          %v2420 = vpack.c.bf16 %v2419, %v2419
          %v2421 = vld [vmem:[%s16] sm:$0xf]
          %v2422 = vld [vmem:[%s16 + $0x4] sm:$0xf]
          %v2423 = vld [vmem:[%s16 + $0x8] sm:$0xf]
          %v2424 = vld [vmem:[%s16 + $0xc] sm:$0xf]
          %v2425 = vld [vmem:[%s16 + $0x10] sm:$0xf]
          %v2426 = vld [vmem:[%s16 + $0x14] sm:$0xf]
          %v2427 = vld [vmem:[%s16 + $0x18] sm:$0xf]
          %v2428 = vld [vmem:[%s16 + $0x1c] sm:$0xf]
          %v2429 = vld [vmem:[%s16 + $0x20] sm:$0xf]
          %v2430 = vld [vmem:[%s16 + $0x24] sm:$0xf]
          %v2431 = vld [vmem:[%s16 + $0x28] sm:$0xf]
          %v2432 = vld [vmem:[%s16 + $0x2c] sm:$0xf]
          %v2433 = vld [vmem:[%s16 + $0x30] sm:$0xf]
          %v2434 = vld [vmem:[%s16 + $0x34] sm:$0xf]
          %v2435 = vld [vmem:[%s16 + $0x38] sm:$0xf]
          %v2436 = vld [vmem:[%s16 + $0x3c] sm:$0xf]
          %v2437 = vld [vmem:[#allocation9] sm:$0x1]
          %v2454 = vunpack.c.l.b16 %v2421
          %v2455 = vunpack.c.l.b16 %v2422
          %v2456 = vunpack.c.l.b16 %v2423
          %v2457 = vunpack.c.l.b16 %v2424
          %v2458 = vunpack.c.l.b16 %v2425
          %v2459 = vunpack.c.l.b16 %v2426
          %v2460 = vunpack.c.l.b16 %v2427
          %v2461 = vunpack.c.l.b16 %v2428
          %v2462 = vunpack.c.l.b16 %v2429
          %v2463 = vunpack.c.l.b16 %v2430
          %v2464 = vunpack.c.l.b16 %v2431
          %v2465 = vunpack.c.l.b16 %v2432
          %v2466 = vunpack.c.l.b16 %v2433
          %v2467 = vunpack.c.l.b16 %v2434
          %v2468 = vunpack.c.l.b16 %v2435
          %v2469 = vunpack.c.l.b16 %v2436
          %v2470 = vpack.c.b16 %v2455, %v2454
          %v2471 = vpack.c.b16 %v2457, %v2456
          %v2472 = vpack.c.b16 %v2459, %v2458
          %v2473 = vpack.c.b16 %v2461, %v2460
          %v2474 = vpack.c.b16 %v2463, %v2462
          %v2475 = vpack.c.b16 %v2465, %v2464
          %v2476 = vpack.c.b16 %v2467, %v2466
          %v2477 = vpack.c.b16 %v2469, %v2468
          %2486 = vmatprep.subr.bf16.mxu0 0
          %2487 = vmatpush1.bf16.msra.mxu0 %v2477
          %2488 = vmatprep.subr.bf16.mxu0 0
          %2489 = vmatpush1.bf16.msra.mxu0 %v2476
          %2490 = vmatprep.subr.bf16.mxu0 0
          %2491 = vmatpush1.bf16.msra.mxu0 %v2475
          %2492 = vmatprep.subr.bf16.mxu0 0
          %2493 = vmatpush1.bf16.msra.mxu0 %v2474
          %2494 = vmatprep.subr.bf16.mxu0 0
          %2495 = vmatpush1.bf16.msra.mxu0 %v2473
          %2496 = vmatprep.subr.bf16.mxu0 0
          %2497 = vmatpush1.bf16.msra.mxu0 %v2472
          %2498 = vmatprep.subr.bf16.mxu0 0
          %2499 = vmatpush1.bf16.msra.mxu0 %v2471
          %2500 = vmatprep.subr.bf16.mxu0 0
          %2501 = vmatpush1.bf16.msra.mxu0 %v2470
          %2502 = vmatprep.subr.bf16.mxu0 0
          %2503 = vmatpush2.bf16.msra.mxu0 0
          %2504 = vmatprep.subr.bf16.mxu0 0
          %2505 = vmatpush2.bf16.msra.mxu0 0
          %2506 = vmatprep.subr.bf16.mxu0 0
          %2507 = vmatpush2.bf16.msra.mxu0 0
          %2508 = vmatprep.subr.bf16.mxu0 0
          %2509 = vmatpush2.bf16.msra.mxu0 0
          %2510 = vmatprep.subr.bf16.mxu0 0
          %2511 = vmatpush2.bf16.msra.mxu0 0
          %2512 = vmatprep.subr.bf16.mxu0 0
          %2513 = vmatpush2.bf16.msra.mxu0 0
          %2514 = vmatprep.subr.bf16.mxu0 0
          %2515 = vmatpush2.bf16.msra.mxu0 0
          %2516 = vmatprep.subr.bf16.mxu0 0
          %2517 = vmatpush2.bf16.msra.mxu0 0
          %2518 = vmatprep.mubr.bf16.mxu0 0
          %2519 = vmatmul.mubr.bf16.gmra.mxu0 %v2420
          %v2520 = vpop.f32.mrf.mxu0
          %v2521 = vadd.f32 %v2437, %v2520
          %v2522 = vpop.f32.mrf.mxu0
          %v2523 = vpop.f32.mrf.mxu0
          %v2524 = vpop.f32.mrf.mxu0
          %2525 = vdwg.mxu0
          %2526 = vst [vmem:[%s827] sm:$0x1] %v2521
        $region116: #{student_forward.1} parent=91 // pred_fallthru
          _
        %s2527 = sand.u32 %s507, 1
        %s2528 = scalar_lea.sflag [#allocation5], %s2527
        %s2529 = sand.u32 %s507, 1
        %s2530 = scalar_lea.vmem [#allocation11], %s2529
        // Predicated region
        $region117: #{student_forward.1} parent=91 // pred_check
          %p2531 = pneg %p517
        $region118: #{student_forward.1} parent=91 // pred_check_branch
          %2533 = sbr.rel (%p2531) target = $region120
        $region119: #{student_forward.1} parent=91 // pred_region
          %s2535 = ssub.s32 16, 16
          %2536 = vsyncadd %s2528, %s2535
          %s2537 = smul.addr %s43, 16
          %s2538 = scalar_lea.hbm %s18, %s2537
          %s2540 = sshll.u32 %s2530, 4
          %s2541 = int_to_ptr.vmem [resolvable:$true] %s2540
          %2543 = dma.vmem_to_hbm [thread:$0]  %s2541, 16, %s2538, %s2528
        $region120: #{student_forward.1} parent=91 // pred_fallthru
          _
      $region92: #{student_forward.1} parent=5 // pred_fallthru
        _
      %p2544 = scmp.le.s32.totalorder 2, %s34
      // Predicated region
      $region121: #{student_forward.1} parent=5 // pred_check
        %p2545 = pneg %p2544
      $region122: #{student_forward.1} parent=5 // pred_check_branch
        %2547 = sbr.rel (%p2545) target = $region124
      $region123: #{student_forward.1} parent=5 // pred_region
        %s2548 = ssub.s32 %s34, 2
        // Predicated region
        $region125: #{student_forward.1} parent=123 // pred_check
          %p2549 = pneg %p523
        $region126: #{student_forward.1} parent=123 // pred_check_branch
          %2551 = sbr.rel (%p2549) target = $region128
        $region127: #{student_forward.1} parent=123 // pred_region
          %s2552 = sand.u32 %s508, 1
          %s2553 = scalar_lea.sflag [#allocation5], %s2552
          %s2554 = sand.u32 %s508, 1
          %s2555 = scalar_lea.vmem [#allocation11], %s2554
          %2556 = dma.done %s2553, 16
        $region128: #{student_forward.1} parent=123 // pred_fallthru
          _
      $region124: #{student_forward.1} parent=5 // pred_fallthru
        _
    $region6: #{student_forward.1} parent=1 // loop_footer
      %s38 = sadd.s32 1, %s34
    $region7: #{student_forward.1} parent=1 // loop_footer_branch
      %33 = sbr.rel target = $region3
    $region8: #{student_forward.1} parent=1 // loop_exit
      _
    %2557 = vsyncpa [#allocation4], 1
    %s2558 = scalar_lea.sflag [#allocation4], 1
    %2559 = vsyncpa %s2558, 1
    %2560 = vsyncpa [#allocation7], 1
    %s2561 = scalar_lea.sflag [#allocation7], 1
    %2562 = vsyncpa %s2561, 1
    %2563 = vsyncpa [#allocation10], 1
    %2564 = vsyncpa [#allocation5], 1
    %s2565 = scalar_lea.sflag [#allocation5], 1
    %2566 = vsyncpa %s2565, 1

</llo_original>
